<compile_context>
chip_gen: v5e
topology: v5e:2x2
jax: 0.10.0
libtpu: 0.0.40
codegen_flags: <defaults>
</compile_context>

<pallas_src>
import functools

import jax
import jax.numpy as jnp
from jax.experimental import pallas as pl
from jax.experimental.pallas import tpu as pltpu

LN_EPS = 1e-5

PARAM_ORDER = ("wqkv_t", "bqkv", "wo_t", "bo", "ln1_g", "ln1_b",
               "w1_t", "b1", "w2_t", "b2", "ln2_g", "ln2_b")


def _layernorm(x, gamma, beta):
    mu = jnp.mean(x, axis=-1, keepdims=True)
    xc = x - mu
    var = jnp.mean(xc * xc, axis=-1, keepdims=True)
    inv = jax.lax.rsqrt(var + LN_EPS)
    return xc * inv * gamma + beta


def fused_encoder_kernel(x_ref, pe_ref,
                         wqkv_ref, bqkv_ref, wo_ref, bo_ref,
                         g1_ref, be1_ref, w1_ref, b1_ref, w2_ref, b2_ref,
                         g2_ref, be2_ref,
                         o_ref, act_ref,
                         *, num_heads, weights_resident, approx_softmax):
    layer = pl.program_id(1)
    n_layers = pl.num_programs(1)
    # resident weights: full stack in VMEM, index by layer; otherwise the
    # BlockSpec already streamed this layer's slice (leading dim == 1).
    li = layer if weights_resident else 0

    Bc, S, D = o_ref.shape
    Dh = D // num_heads

    # Layer 0: load the input chunk, fuse the positional-encoding add, and
    # park the f32 residual stream in the VMEM scratch that carries the
    # activation across layer iterations (HBM is touched once per chunk).
    @pl.when(layer == 0)
    def _():
        act_ref[...] = (x_ref[...].astype(jnp.float32)
                        + pe_ref[...].astype(jnp.float32)).reshape(Bc * S, D)

    x2 = act_ref[...]                                   # (Bc*S, D) f32
    xb = x2.astype(jnp.bfloat16)

    # ---- QKV projection (weights pre-transposed, Q pre-scaled on host) ----
    qkv = jnp.dot(xb, wqkv_ref[li],
                  preferred_element_type=jnp.float32) + bqkv_ref[li]
    q = qkv[:, 0 * D:1 * D].reshape(Bc, S, D).astype(jnp.bfloat16)
    k = qkv[:, 1 * D:2 * D].reshape(Bc, S, D).astype(jnp.bfloat16)
    v = qkv[:, 2 * D:3 * D].reshape(Bc, S, D).astype(jnp.bfloat16)

    # ---- self-attention ----
    # Each head's output is consumed immediately by a partial output
    # projection (the MXU contraction performs the head-concat), so there is
    # no lane-axis concatenate and no per-head live ranges at the end.
    # TODO(synk): for production shapes pad Dh to a multiple of 128 (MXU
    # depth) and tile attention flash-style over KV once S grows.
    wo = wo_ref[li]                                     # (D, D) bf16
    attn_out = jnp.zeros((Bc * S, D), jnp.float32) + bo_ref[li]
    for h in range(num_heads):
        sl = slice(h * Dh, (h + 1) * Dh)
        qh, kh, vh = q[:, :, sl], k[:, :, sl], v[:, :, sl]       # (Bc, S, Dh)
        s = jnp.einsum("bqd,bkd->bqk", qh, kh,
                       preferred_element_type=jnp.float32)        # (Bc, S, S)
        s = s - jnp.max(s, axis=-1, keepdims=True)
        p = jnp.exp(s)
        denom = jnp.sum(p, axis=-1, keepdims=True)
        if approx_softmax:
            p = p * pl.reciprocal(denom, approx=True)
        else:
            p = p / denom
        oh = jnp.einsum("bqk,bkd->bqd", p.astype(jnp.bfloat16), vh,
                        preferred_element_type=jnp.float32)       # (Bc, S, Dh)
        attn_out = attn_out + jnp.dot(
            oh.reshape(Bc * S, Dh).astype(jnp.bfloat16), wo[sl, :],
            preferred_element_type=jnp.float32)

    # residual + norm1 (dropout1 = identity in eval mode)
    h1 = _layernorm(x2 + attn_out, g1_ref[li], be1_ref[li])

    # ---- MLP: Linear(D, 4D) -> ReLU -> Linear(4D, D) ----
    # TODO(synk): on v7x, fp8 storage for w1/w2 would halve the dominant
    # weight-stream bytes (quality tradeoff, gated behind evaluation).
    ff = jnp.dot(h1.astype(jnp.bfloat16), w1_ref[li],
                 preferred_element_type=jnp.float32) + b1_ref[li]
    ff = jnp.maximum(ff, 0.0)
    ff = jnp.dot(ff.astype(jnp.bfloat16), w2_ref[li],
                 preferred_element_type=jnp.float32) + b2_ref[li]

    # residual + norm2 (dropout2 = identity in eval mode)
    out = _layernorm(h1 + ff, g2_ref[li], be2_ref[li])
    act_ref[...] = out                                   # carry to next layer

    @pl.when(layer == n_layers - 1)
    def _():
        # TODO(synk): for D not a multiple of 128, a wrapper-side lane-dense
        # (B, S*D) output layout would avoid masked partial stores here.
        o_ref[...] = out.reshape(Bc, S, D).astype(o_ref.dtype)


def prepare_params(layer_params, *, num_heads, matmul_dtype=jnp.bfloat16):
    """Stack per-layer params, pre-transpose weights, fold 1/sqrt(Dh) into Q,
    and cast matmul weights to bf16 (biases / LN params stay f32)."""
    D = layer_params[0]["wqkv"].shape[1]
    Dh = D // num_heads
    scale = 1.0 / (Dh ** 0.5)
    per_key = {k: [] for k in PARAM_ORDER}
    for p in layer_params:
        wqkv_t = p["wqkv"].T.astype(jnp.float32)                 # (D, 3D)
        bqkv = p["bqkv"].reshape(1, 3 * D).astype(jnp.float32)
        wqkv_t = wqkv_t.at[:, :D].multiply(scale)                # fold scale
        bqkv = bqkv.at[:, :D].multiply(scale)
        per_key["wqkv_t"].append(wqkv_t.astype(matmul_dtype))
        per_key["bqkv"].append(bqkv)
        per_key["wo_t"].append(p["wo"].T.astype(matmul_dtype))
        per_key["bo"].append(p["bo"].reshape(1, D).astype(jnp.float32))
        per_key["ln1_g"].append(p["ln1_g"].reshape(1, D).astype(jnp.float32))
        per_key["ln1_b"].append(p["ln1_b"].reshape(1, D).astype(jnp.float32))
        per_key["w1_t"].append(p["w1"].T.astype(matmul_dtype))
        per_key["b1"].append(p["b1"].reshape(1, 4 * D).astype(jnp.float32))
        per_key["w2_t"].append(p["w2"].T.astype(matmul_dtype))
        per_key["b2"].append(p["b2"].reshape(1, D).astype(jnp.float32))
        per_key["ln2_g"].append(p["ln2_g"].reshape(1, D).astype(jnp.float32))
        per_key["ln2_b"].append(p["ln2_b"].reshape(1, D).astype(jnp.float32))
    return {k: jnp.stack(v, axis=0) for k, v in per_key.items()}


def _tpu_vmem_capacity_bytes():
    try:
        return int(pltpu.get_tpu_info().vmem_capacity_bytes)
    except Exception:
        return 64 * 1024 * 1024          # conservative (v7x-sized) fallback


def _device_kind():
    try:
        return jax.devices()[0].device_kind.lower()
    except Exception:
        return ""


def _chunk_footprint_bytes(bc, S, D, num_heads, per_layer_w_bytes, num_layers,
                           resident):
    """Rough VMEM footprint of one (chunk, layer) step (conservative)."""
    rows = bc * S
    f32, bf16 = 4, 2
    b = rows * D * f32                                # activation scratch
    b += 2 * 2 * bc * S * D * f32                     # in + out blocks, 2x buf
    b += rows * 3 * D * (f32 + bf16)                  # qkv f32 + bf16 q/k/v
    b += rows * 4 * D * (f32 + bf16)                  # MLP hidden
    b += 2 * bc * S * S * f32 * min(num_heads, 2)     # scores + probs live
    b += 3 * rows * D * f32                           # h1 / attn_out / out
    # resident weights may still be double-buffered by the pipeliner -> 2x
    b += per_layer_w_bytes * (2 * num_layers if resident else 2)
    return b


def transformer_forward(x, pos_enc, layer_params, *, num_heads=2,
                        target_chunk_rows=None, approx_softmax=True):
    B, S, D = x.shape
    assert D % num_heads == 0
    num_layers = len(layer_params)
    stacked = prepare_params(layer_params, num_heads=num_heads)
    weights = [stacked[k] for k in PARAM_ORDER]
    total_w_bytes = sum(int(w.size) * w.dtype.itemsize for w in weights)
    per_layer_w_bytes = max(1, total_w_bytes // num_layers)

    # --- per-generation sizing --------------------------------------------
    vmem_cap = _tpu_vmem_capacity_bytes()
    budget = int(vmem_cap * 0.70)             # headroom for Mosaic scratch
    kind = _device_kind()
    two_tc = ("v7" in kind) or ("tpu7" in kind) or ("7x" in kind)
    if target_chunk_rows is None:
        if "v6" in kind:
            target_chunk_rows = 1024          # AI ~ Bc*S >= ~640 on v6e
        elif two_tc:
            target_chunk_rows = 512           # v7x: smaller VMEM, faster HBM
        else:
            target_chunk_rows = 256           # v5e / unknown

    # weight residency: stream all layers' weights into VMEM once per kernel
    weights_resident = (2 * total_w_bytes) <= int(0.5 * budget)

    # --- batch chunking (pad instead of shrinking bc to a divisor) ---------
    bc = max(1, min(B, max(1, target_chunk_rows // max(S, 1))))
    if two_tc and B >= 2:
        bc = min(bc, -(-B // 2))              # >=2 chunks so both TCs work
    while bc > 1 and _chunk_footprint_bytes(
            bc, S, D, num_heads, per_layer_w_bytes, num_layers,
            weights_resident) > budget:
        bc = max(1, bc // 2)
    n_chunks = -(-B // bc)
    B_pad = n_chunks * bc
    x_in = x if B_pad == B else jnp.pad(x, ((0, B_pad - B), (0, 0), (0, 0)))

    est = _chunk_footprint_bytes(bc, S, D, num_heads, per_layer_w_bytes,
                                 num_layers, weights_resident)
    vmem_limit = max(32 * 1024 * 1024, int(est * 1.5))
    vmem_limit = min(vmem_limit, int(vmem_cap * 0.90))

    pe = pos_enc[:, :S, :].astype(jnp.float32)                   # (1, S, D)

    if weights_resident:
        # full stacked array as one block, constant index -> DMA'd once.
        weight_specs = [pl.BlockSpec(tuple(w.shape), lambda i, l: (0, 0, 0))
                        for w in weights]
    else:
        # per-layer streaming (large models / small-VMEM parts like v7x).
        weight_specs = [pl.BlockSpec((1,) + tuple(w.shape[1:]),
                                     lambda i, l: (l, 0, 0))
                        for w in weights]

    out = pl.pallas_call(
        functools.partial(fused_encoder_kernel, num_heads=num_heads,
                          weights_resident=weights_resident,
                          approx_softmax=approx_softmax),
        out_shape=jax.ShapeDtypeStruct((B_pad, S, D), x.dtype),
        grid=(n_chunks, num_layers),
        in_specs=[pl.BlockSpec((bc, S, D), lambda i, l: (i, 0, 0)),
                  pl.BlockSpec((1, S, D), lambda i, l: (0, 0, 0))]
                 + weight_specs,
        out_specs=pl.BlockSpec((bc, S, D), lambda i, l: (i, 0, 0)),
        scratch_shapes=[pltpu.VMEM((bc * S, D), jnp.float32)],
        compiler_params=pltpu.CompilerParams(
            dimension_semantics=("parallel", "arbitrary"),
            vmem_limit_bytes=vmem_limit),
    )(x_in, pe, *weights)
    return out[:B] if B_pad != B else out


def init_layer_params(key, D):
    ks = jax.random.split(key, 8)
    u = lambda k, shape, s=0.1: jax.random.uniform(k, shape, jnp.float32, -s, s)
    return {
        "wqkv": u(ks[0], (3 * D, D)),
        "bqkv": u(ks[1], (1, 3 * D)),
        "wo":   u(ks[2], (D, D)),
        "bo":   u(ks[3], (1, D)),
        "ln1_g": jnp.ones((1, D), jnp.float32),
        "ln1_b": jnp.zeros((1, D), jnp.float32),
        "w1":   u(ks[4], (4 * D, D)),
        "b1":   u(ks[5], (1, 4 * D)),
        "w2":   u(ks[6], (D, 4 * D)),
        "b2":   u(ks[7], (1, D)),
        "ln2_g": jnp.ones((1, D), jnp.float32),
        "ln2_b": jnp.zeros((1, D), jnp.float32),
    }


def reference_forward(x, pos_enc, layer_params, *, num_heads=2):
    S = x.shape[1]
    x = x + pos_enc[:, :S, :]
    for p in layer_params:
        qkv = jnp.einsum("bsd,ed->bse", x, p["wqkv"]) + p["bqkv"][None]
        D = x.shape[-1]
        Dh = D // num_heads
        q, k, v = qkv[..., :D], qkv[..., D:2 * D], qkv[..., 2 * D:]
        rs = lambda t: t.reshape(t.shape[0], S, num_heads, Dh).transpose(0, 2, 1, 3)
        q, k, v = rs(q), rs(k), rs(v)
        s = jnp.einsum("bhqd,bhkd->bhqk", q, k) / (Dh ** 0.5)
        pmat = jax.nn.softmax(s, axis=-1)
        a = jnp.einsum("bhqk,bhkd->bhqd", pmat, v).transpose(0, 2, 1, 3).reshape(x.shape)
        a = jnp.einsum("bsd,ed->bse", a, p["wo"]) + p["bo"][None]
        h = x + a
        mu = h.mean(-1, keepdims=True)
        h = (h - mu) / jnp.sqrt(((h - mu) ** 2).mean(-1, keepdims=True) + LN_EPS)
        h = h * p["ln1_g"][None] + p["ln1_b"][None]
        ff = jnp.maximum(jnp.einsum("bsd,ed->bse", h, p["w1"]) + p["b1"][None], 0.0)
        ff = jnp.einsum("bsd,ed->bse", ff, p["w2"]) + p["b2"][None]
        h2 = h + ff
        mu = h2.mean(-1, keepdims=True)
        h2 = (h2 - mu) / jnp.sqrt(((h2 - mu) ** 2).mean(-1, keepdims=True) + LN_EPS)
        x = h2 * p["ln2_g"][None] + p["ln2_b"][None]
    return x


if __name__ == "__main__":
    B, S, D = 2, 8, 32
    NUM_LAYERS, NUM_HEADS = 2, 2

    key = jax.random.PRNGKey(0)
    k_x, k_pos, k_l0, k_l1 = jax.random.split(key, 4)

    x = jax.random.normal(k_x, (B, S, D), jnp.float32)
    pos_enc = jax.random.uniform(k_pos, (1, 512, D), jnp.float32, -0.1, 0.1)
    layer_params = [init_layer_params(k, D) for k in (k_l0, k_l1)]

    out = transformer_forward(x, pos_enc, layer_params, num_heads=NUM_HEADS)
    out = jax.block_until_ready(out)

    ref = reference_forward(x, pos_enc, layer_params, num_heads=NUM_HEADS)
    assert out.shape == (B, S, D)
    # matmuls run in bf16 on the MXU (f32 accumulation) -> looser tolerance
    # than the pure-f32 reference.
    assert jnp.allclose(out, ref, atol=2e-2, rtol=2e-2), "mismatch vs JAX reference"

    # TODO(synk): attn_weights / get_attention_rollout are module side-state,
    # not part of forward()'s return value; not exported from the kernel.
    print("KERNEL_OK")
</pallas_src>

<mosaic_0001>
module attributes {stable_mosaic.version = 11 : i64} {
  func.func @fused_encoder_kernel(%arg0: i32, %arg1: i32, %arg2: memref<2x8x32xf32, #tpu.memory_space<vmem>>, %arg3: memref<1x8x32xf32, #tpu.memory_space<vmem>>, %arg4: memref<2x32x96xbf16, #tpu.memory_space<vmem>>, %arg5: memref<2x1x96xf32, #tpu.memory_space<vmem>>, %arg6: memref<2x32x32xbf16, #tpu.memory_space<vmem>>, %arg7: memref<2x1x32xf32, #tpu.memory_space<vmem>>, %arg8: memref<2x1x32xf32, #tpu.memory_space<vmem>>, %arg9: memref<2x1x32xf32, #tpu.memory_space<vmem>>, %arg10: memref<2x32x128xbf16, #tpu.memory_space<vmem>>, %arg11: memref<2x1x128xf32, #tpu.memory_space<vmem>>, %arg12: memref<2x128x32xbf16, #tpu.memory_space<vmem>>, %arg13: memref<2x1x32xf32, #tpu.memory_space<vmem>>, %arg14: memref<2x1x32xf32, #tpu.memory_space<vmem>>, %arg15: memref<2x1x32xf32, #tpu.memory_space<vmem>>, %arg16: memref<2x8x32xf32, #tpu.memory_space<vmem>>, %arg17: memref<16x32xf32, #tpu.memory_space<vmem>>) attributes {dimension_semantics = [#tpu.dimension_semantics<parallel>, #tpu.dimension_semantics<arbitrary>], iteration_bounds = array<i64: 1, 2>, scalar_prefetch = 0 : i64, scratch_operands = 1 : i64, tpu.core_type = #tpu.core_type<tc>, window_params = [{transform_indices = @transform_0, window_bounds = array<i64: 2, 8, 32>}, {pipeline_mode = #tpu.pipeline_mode<synchronous>, transform_indices = @transform_1, window_bounds = array<i64: 1, 8, 32>}, {pipeline_mode = #tpu.pipeline_mode<synchronous>, transform_indices = @transform_2, window_bounds = array<i64: 2, 32, 96>}, {pipeline_mode = #tpu.pipeline_mode<synchronous>, transform_indices = @transform_3, window_bounds = array<i64: 2, 1, 96>}, {pipeline_mode = #tpu.pipeline_mode<synchronous>, transform_indices = @transform_4, window_bounds = array<i64: 2, 32, 32>}, {pipeline_mode = #tpu.pipeline_mode<synchronous>, transform_indices = @transform_5, window_bounds = array<i64: 2, 1, 32>}, {pipeline_mode = #tpu.pipeline_mode<synchronous>, transform_indices = @transform_6, window_bounds = array<i64: 2, 1, 32>}, {pipeline_mode = #tpu.pipeline_mode<synchronous>, transform_indices = @transform_7, window_bounds = array<i64: 2, 1, 32>}, {pipeline_mode = #tpu.pipeline_mode<synchronous>, transform_indices = @transform_8, window_bounds = array<i64: 2, 32, 128>}, {pipeline_mode = #tpu.pipeline_mode<synchronous>, transform_indices = @transform_9, window_bounds = array<i64: 2, 1, 128>}, {pipeline_mode = #tpu.pipeline_mode<synchronous>, transform_indices = @transform_10, window_bounds = array<i64: 2, 128, 32>}, {pipeline_mode = #tpu.pipeline_mode<synchronous>, transform_indices = @transform_11, window_bounds = array<i64: 2, 1, 32>}, {pipeline_mode = #tpu.pipeline_mode<synchronous>, transform_indices = @transform_12, window_bounds = array<i64: 2, 1, 32>}, {pipeline_mode = #tpu.pipeline_mode<synchronous>, transform_indices = @transform_13, window_bounds = array<i64: 2, 1, 32>}, {transform_indices = @transform_14, window_bounds = array<i64: 2, 8, 32>}]} {
    %c0_i32 = arith.constant 0 : i32
    %0 = arith.cmpi eq, %arg1, %c0_i32 : i32
    %1 = arith.extui %0 : i1 to i32
    %c0_i32_0 = arith.constant 0 : i32
    %2 = arith.cmpi ne, %1, %c0_i32_0 : i32
    scf.if %2 {
      %c0_53 = arith.constant 0 : index
      %c0_54 = arith.constant 0 : index
      %c0_55 = arith.constant 0 : index
      %154 = vector.load %arg2[%c0_53, %c0_54, %c0_55] : memref<2x8x32xf32, #tpu.memory_space<vmem>>, vector<2x8x32xf32>
      %c0_56 = arith.constant 0 : index
      %c0_57 = arith.constant 0 : index
      %c0_58 = arith.constant 0 : index
      %155 = vector.load %arg3[%c0_56, %c0_57, %c0_58] : memref<1x8x32xf32, #tpu.memory_space<vmem>>, vector<1x8x32xf32>
      %156 = vector.broadcast %155 : vector<1x8x32xf32> to vector<2x8x32xf32>
      %157 = arith.addf %154, %156 : vector<2x8x32xf32>
      %158 = vector.shape_cast %157 : vector<2x8x32xf32> to vector<16x32xf32>
      %c0_59 = arith.constant 0 : index
      %c0_60 = arith.constant 0 : index
      %159 = vector.load %arg17[%c0_59, %c0_60] : memref<16x32xf32, #tpu.memory_space<vmem>>, vector<16x32xf32>
      tpu.vector_store %arg17[%c0_59, %c0_60], %158 {strides = array<i32>} : memref<16x32xf32, #tpu.memory_space<vmem>>, vector<16x32xf32>,
    } else {
    }
    %c0 = arith.constant 0 : index
    %c0_1 = arith.constant 0 : index
    %3 = vector.load %arg17[%c0, %c0_1] : memref<16x32xf32, #tpu.memory_space<vmem>>, vector<16x32xf32>
    %4 = arith.truncf %3 : vector<16x32xf32> to vector<16x32xbf16>
    %5 = arith.index_cast %arg1 : i32 to index
    %c0_2 = arith.constant 0 : index
    %c0_3 = arith.constant 0 : index
    %6 = vector.load %arg4[%5, %c0_2, %c0_3] : memref<2x32x96xbf16, #tpu.memory_space<vmem>>, vector<1x32x96xbf16>
    %7 = vector.shape_cast %6 : vector<1x32x96xbf16> to vector<32x96xbf16>
    %cst = arith.constant dense<0.000000e+00> : vector<16x96xf32>
    %8 = tpu.matmul %4, %7, %cst {dimension_numbers = #tpu.dot_dimension_numbers<[1], [0], [0], [1], [0, 0, 1, 1], [], []>} : vector<16x32xbf16>, vector<32x96xbf16>, vector<16x96xf32> -> vector<16x96xf32>
    %9 = arith.index_cast %arg1 : i32 to index
    %c0_4 = arith.constant 0 : index
    %c0_5 = arith.constant 0 : index
    %10 = vector.load %arg5[%9, %c0_4, %c0_5] : memref<2x1x96xf32, #tpu.memory_space<vmem>>, vector<1x1x96xf32>
    %11 = vector.shape_cast %10 : vector<1x1x96xf32> to vector<1x96xf32>
    %12 = vector.broadcast %11 : vector<1x96xf32> to vector<16x96xf32>
    %13 = arith.addf %8, %12 : vector<16x96xf32>
    %14 = vector.extract_strided_slice %13 {offsets = [0, 0], sizes = [16, 32], strides = [1, 1]} : vector<16x96xf32> to vector<16x32xf32>
    %15 = vector.shape_cast %14 : vector<16x32xf32> to vector<2x8x32xf32>
    %16 = arith.truncf %15 : vector<2x8x32xf32> to vector<2x8x32xbf16>
    %17 = vector.extract_strided_slice %13 {offsets = [0, 32], sizes = [16, 32], strides = [1, 1]} : vector<16x96xf32> to vector<16x32xf32>
    %18 = vector.shape_cast %17 : vector<16x32xf32> to vector<2x8x32xf32>
    %19 = arith.truncf %18 : vector<2x8x32xf32> to vector<2x8x32xbf16>
    %20 = vector.extract_strided_slice %13 {offsets = [0, 64], sizes = [16, 32], strides = [1, 1]} : vector<16x96xf32> to vector<16x32xf32>
    %21 = vector.shape_cast %20 : vector<16x32xf32> to vector<2x8x32xf32>
    %22 = arith.truncf %21 : vector<2x8x32xf32> to vector<2x8x32xbf16>
    %23 = arith.index_cast %arg1 : i32 to index
    %c0_6 = arith.constant 0 : index
    %c0_7 = arith.constant 0 : index
    %24 = vector.load %arg6[%23, %c0_6, %c0_7] : memref<2x32x32xbf16, #tpu.memory_space<vmem>>, vector<1x32x32xbf16>
    %25 = vector.shape_cast %24 : vector<1x32x32xbf16> to vector<32x32xbf16>
    %cst_8 = arith.constant 0.000000e+00 : f32
    %26 = vector.broadcast %cst_8 : f32 to vector<16x32xf32>
    %27 = arith.index_cast %arg1 : i32 to index
    %c0_9 = arith.constant 0 : index
    %c0_10 = arith.constant 0 : index
    %28 = vector.load %arg7[%27, %c0_9, %c0_10] : memref<2x1x32xf32, #tpu.memory_space<vmem>>, vector<1x1x32xf32>
    %29 = vector.shape_cast %28 : vector<1x1x32xf32> to vector<1x32xf32>
    %30 = vector.broadcast %29 : vector<1x32xf32> to vector<16x32xf32>
    %31 = arith.addf %26, %30 : vector<16x32xf32>
    %32 = vector.extract_strided_slice %16 {offsets = [0, 0, 0], sizes = [2, 8, 16], strides = [1, 1, 1]} : vector<2x8x32xbf16> to vector<2x8x16xbf16>
    %33 = vector.extract_strided_slice %19 {offsets = [0, 0, 0], sizes = [2, 8, 16], strides = [1, 1, 1]} : vector<2x8x32xbf16> to vector<2x8x16xbf16>
    %34 = vector.extract_strided_slice %22 {offsets = [0, 0, 0], sizes = [2, 8, 16], strides = [1, 1, 1]} : vector<2x8x32xbf16> to vector<2x8x16xbf16>
    "tpu.trace_start"() <{level = 10 : i32, message = "bqd,bkd->bqk"}> : () -> ()
    %cst_11 = arith.constant dense<0.000000e+00> : vector<2x8x8xf32>
    %35 = tpu.matmul %32, %33, %cst_11 {dimension_numbers = #tpu.dot_dimension_numbers<[2], [2], [1], [1], [0, 0, 0, 1, 1, 1], [0], [0]>} : vector<2x8x16xbf16>, vector<2x8x16xbf16>, vector<2x8x8xf32> -> vector<2x8x8xf32>
    "tpu.trace_stop"() : () -> ()
    %cst_12 = arith.constant dense<0xFF800000> : vector<2x8xf32>
    %36 = vector.multi_reduction <maximumf>, %35, %cst_12 [2] : vector<2x8x8xf32> to vector<2x8xf32>
    %37 = vector.shape_cast %36 : vector<2x8xf32> to vector<2x8x1xf32>
    %38 = vector.broadcast %37 : vector<2x8x1xf32> to vector<2x8x8xf32>
    %39 = arith.subf %35, %38 : vector<2x8x8xf32>
    %40 = math.exp %39 : vector<2x8x8xf32>
    %cst_13 = arith.constant dense<0.000000e+00> : vector<2x8xf32>
    %41 = vector.multi_reduction <add>, %40, %cst_13 [2] : vector<2x8x8xf32> to vector<2x8xf32>
    %42 = vector.shape_cast %41 : vector<2x8xf32> to vector<2x8x1xf32>
    %43 = tpu.reciprocal %42 {approx = true} : vector<2x8x1xf32> -> vector<2x8x1xf32>
    %44 = vector.broadcast %43 : vector<2x8x1xf32> to vector<2x8x8xf32>
    %45 = arith.mulf %40, %44 : vector<2x8x8xf32>
    %46 = arith.truncf %45 : vector<2x8x8xf32> to vector<2x8x8xbf16>
    "tpu.trace_start"() <{level = 10 : i32, message = "bqk,bkd->bqd"}> : () -> ()
    %cst_14 = arith.constant dense<0.000000e+00> : vector<2x8x16xf32>
    %47 = tpu.matmul %46, %34, %cst_14 {dimension_numbers = #tpu.dot_dimension_numbers<[2], [1], [1], [2], [0, 0, 0, 1, 1, 2], [0], [0]>} : vector<2x8x8xbf16>, vector<2x8x16xbf16>, vector<2x8x16xf32> -> vector<2x8x16xf32>
    "tpu.trace_stop"() : () -> ()
    %48 = vector.shape_cast %47 : vector<2x8x16xf32> to vector<16x16xf32>
    %49 = arith.truncf %48 : vector<16x16xf32> to vector<16x16xbf16>
    %50 = vector.extract_strided_slice %25 {offsets = [0, 0], sizes = [16, 32], strides = [1, 1]} : vector<32x32xbf16> to vector<16x32xbf16>
    %cst_15 = arith.constant dense<0.000000e+00> : vector<16x32xf32>
    %51 = tpu.matmul %49, %50, %cst_15 {dimension_numbers = #tpu.dot_dimension_numbers<[1], [0], [0], [1], [0, 0, 1, 1], [], []>} : vector<16x16xbf16>, vector<16x32xbf16>, vector<16x32xf32> -> vector<16x32xf32>
    %52 = arith.addf %31, %51 : vector<16x32xf32>
    %53 = vector.extract_strided_slice %16 {offsets = [0, 0, 16], sizes = [2, 8, 16], strides = [1, 1, 1]} : vector<2x8x32xbf16> to vector<2x8x16xbf16>
    %54 = vector.extract_strided_slice %19 {offsets = [0, 0, 16], sizes = [2, 8, 16], strides = [1, 1, 1]} : vector<2x8x32xbf16> to vector<2x8x16xbf16>
    %55 = vector.extract_strided_slice %22 {offsets = [0, 0, 16], sizes = [2, 8, 16], strides = [1, 1, 1]} : vector<2x8x32xbf16> to vector<2x8x16xbf16>
    "tpu.trace_start"() <{level = 10 : i32, message = "bqd,bkd->bqk"}> : () -> ()
    %cst_16 = arith.constant dense<0.000000e+00> : vector<2x8x8xf32>
    %56 = tpu.matmul %53, %54, %cst_16 {dimension_numbers = #tpu.dot_dimension_numbers<[2], [2], [1], [1], [0, 0, 0, 1, 1, 1], [0], [0]>} : vector<2x8x16xbf16>, vector<2x8x16xbf16>, vector<2x8x8xf32> -> vector<2x8x8xf32>
    "tpu.trace_stop"() : () -> ()
    %cst_17 = arith.constant dense<0xFF800000> : vector<2x8xf32>
    %57 = vector.multi_reduction <maximumf>, %56, %cst_17 [2] : vector<2x8x8xf32> to vector<2x8xf32>
    %58 = vector.shape_cast %57 : vector<2x8xf32> to vector<2x8x1xf32>
    %59 = vector.broadcast %58 : vector<2x8x1xf32> to vector<2x8x8xf32>
    %60 = arith.subf %56, %59 : vector<2x8x8xf32>
    %61 = math.exp %60 : vector<2x8x8xf32>
    %cst_18 = arith.constant dense<0.000000e+00> : vector<2x8xf32>
    %62 = vector.multi_reduction <add>, %61, %cst_18 [2] : vector<2x8x8xf32> to vector<2x8xf32>
    %63 = vector.shape_cast %62 : vector<2x8xf32> to vector<2x8x1xf32>
    %64 = tpu.reciprocal %63 {approx = true} : vector<2x8x1xf32> -> vector<2x8x1xf32>
    %65 = vector.broadcast %64 : vector<2x8x1xf32> to vector<2x8x8xf32>
    %66 = arith.mulf %61, %65 : vector<2x8x8xf32>
    %67 = arith.truncf %66 : vector<2x8x8xf32> to vector<2x8x8xbf16>
    "tpu.trace_start"() <{level = 10 : i32, message = "bqk,bkd->bqd"}> : () -> ()
    %cst_19 = arith.constant dense<0.000000e+00> : vector<2x8x16xf32>
    %68 = tpu.matmul %67, %55, %cst_19 {dimension_numbers = #tpu.dot_dimension_numbers<[2], [1], [1], [2], [0, 0, 0, 1, 1, 2], [0], [0]>} : vector<2x8x8xbf16>, vector<2x8x16xbf16>, vector<2x8x16xf32> -> vector<2x8x16xf32>
    "tpu.trace_stop"() : () -> ()
    %69 = vector.shape_cast %68 : vector<2x8x16xf32> to vector<16x16xf32>
    %70 = arith.truncf %69 : vector<16x16xf32> to vector<16x16xbf16>
    %71 = vector.extract_strided_slice %25 {offsets = [16, 0], sizes = [16, 32], strides = [1, 1]} : vector<32x32xbf16> to vector<16x32xbf16>
    %cst_20 = arith.constant dense<0.000000e+00> : vector<16x32xf32>
    %72 = tpu.matmul %70, %71, %cst_20 {dimension_numbers = #tpu.dot_dimension_numbers<[1], [0], [0], [1], [0, 0, 1, 1], [], []>} : vector<16x16xbf16>, vector<16x32xbf16>, vector<16x32xf32> -> vector<16x32xf32>
    %73 = arith.addf %52, %72 : vector<16x32xf32>
    %74 = arith.addf %3, %73 : vector<16x32xf32>
    %75 = arith.index_cast %arg1 : i32 to index
    %c0_21 = arith.constant 0 : index
    %c0_22 = arith.constant 0 : index
    %76 = vector.load %arg8[%75, %c0_21, %c0_22] : memref<2x1x32xf32, #tpu.memory_space<vmem>>, vector<1x1x32xf32>
    %77 = vector.shape_cast %76 : vector<1x1x32xf32> to vector<1x32xf32>
    %78 = arith.index_cast %arg1 : i32 to index
    %c0_23 = arith.constant 0 : index
    %c0_24 = arith.constant 0 : index
    %79 = vector.load %arg9[%78, %c0_23, %c0_24] : memref<2x1x32xf32, #tpu.memory_space<vmem>>, vector<1x1x32xf32>
    %80 = vector.shape_cast %79 : vector<1x1x32xf32> to vector<1x32xf32>
    %cst_25 = arith.constant dense<0.000000e+00> : vector<16xf32>
    %81 = vector.multi_reduction <add>, %74, %cst_25 [1] : vector<16x32xf32> to vector<16xf32>
    %82 = vector.shape_cast %81 : vector<16xf32> to vector<16x1xf32>
    %cst_26 = arith.constant 3.200000e+01 : f32
    %83 = vector.broadcast %cst_26 : f32 to vector<16x1xf32>
    %84 = arith.divf %82, %83 : vector<16x1xf32>
    %85 = vector.broadcast %84 : vector<16x1xf32> to vector<16x32xf32>
    %86 = arith.subf %74, %85 : vector<16x32xf32>
    %87 = arith.mulf %86, %86 : vector<16x32xf32>
    %cst_27 = arith.constant dense<0.000000e+00> : vector<16xf32>
    %88 = vector.multi_reduction <add>, %87, %cst_27 [1] : vector<16x32xf32> to vector<16xf32>
    %89 = vector.shape_cast %88 : vector<16xf32> to vector<16x1xf32>
    %cst_28 = arith.constant 3.200000e+01 : f32
    %90 = vector.broadcast %cst_28 : f32 to vector<16x1xf32>
    %91 = arith.divf %89, %90 : vector<16x1xf32>
    %cst_29 = arith.constant 9.99999974E-6 : f32
    %92 = vector.broadcast %cst_29 : f32 to vector<16x1xf32>
    %93 = arith.addf %91, %92 : vector<16x1xf32>
    %94 = math.rsqrt %93 : vector<16x1xf32>
    %95 = vector.broadcast %94 : vector<16x1xf32> to vector<16x32xf32>
    %96 = arith.mulf %86, %95 : vector<16x32xf32>
    %97 = vector.broadcast %77 : vector<1x32xf32> to vector<16x32xf32>
    %98 = arith.mulf %96, %97 : vector<16x32xf32>
    %99 = vector.broadcast %80 : vector<1x32xf32> to vector<16x32xf32>
    %100 = arith.addf %98, %99 : vector<16x32xf32>
    %101 = arith.truncf %100 : vector<16x32xf32> to vector<16x32xbf16>
    %102 = arith.index_cast %arg1 : i32 to index
    %c0_30 = arith.constant 0 : index
    %c0_31 = arith.constant 0 : index
    %103 = vector.load %arg10[%102, %c0_30, %c0_31] : memref<2x32x128xbf16, #tpu.memory_space<vmem>>, vector<1x32x128xbf16>
    %104 = vector.shape_cast %103 : vector<1x32x128xbf16> to vector<32x128xbf16>
    %cst_32 = arith.constant dense<0.000000e+00> : vector<16x128xf32>
    %105 = tpu.matmul %101, %104, %cst_32 {dimension_numbers = #tpu.dot_dimension_numbers<[1], [0], [0], [1], [0, 0, 1, 1], [], []>} : vector<16x32xbf16>, vector<32x128xbf16>, vector<16x128xf32> -> vector<16x128xf32>
    %106 = arith.index_cast %arg1 : i32 to index
    %c0_33 = arith.constant 0 : index
    %c0_34 = arith.constant 0 : index
    %107 = vector.load %arg11[%106, %c0_33, %c0_34] : memref<2x1x128xf32, #tpu.memory_space<vmem>>, vector<1x1x128xf32>
    %108 = vector.shape_cast %107 : vector<1x1x128xf32> to vector<1x128xf32>
    %109 = vector.broadcast %108 : vector<1x128xf32> to vector<16x128xf32>
    %110 = arith.addf %105, %109 : vector<16x128xf32>
    %cst_35 = arith.constant 0.000000e+00 : f32
    %111 = vector.broadcast %cst_35 : f32 to vector<16x128xf32>
    %112 = arith.maximumf %110, %111 : vector<16x128xf32>
    %113 = arith.truncf %112 : vector<16x128xf32> to vector<16x128xbf16>
    %114 = arith.index_cast %arg1 : i32 to index
    %c0_36 = arith.constant 0 : index
    %c0_37 = arith.constant 0 : index
    %115 = vector.load %arg12[%114, %c0_36, %c0_37] : memref<2x128x32xbf16, #tpu.memory_space<vmem>>, vector<1x128x32xbf16>
    %116 = vector.shape_cast %115 : vector<1x128x32xbf16> to vector<128x32xbf16>
    %cst_38 = arith.constant dense<0.000000e+00> : vector<16x32xf32>
    %117 = tpu.matmul %113, %116, %cst_38 {dimension_numbers = #tpu.dot_dimension_numbers<[1], [0], [0], [1], [0, 0, 1, 1], [], []>} : vector<16x128xbf16>, vector<128x32xbf16>, vector<16x32xf32> -> vector<16x32xf32>
    %118 = arith.index_cast %arg1 : i32 to index
    %c0_39 = arith.constant 0 : index
    %c0_40 = arith.constant 0 : index
    %119 = vector.load %arg13[%118, %c0_39, %c0_40] : memref<2x1x32xf32, #tpu.memory_space<vmem>>, vector<1x1x32xf32>
    %120 = vector.shape_cast %119 : vector<1x1x32xf32> to vector<1x32xf32>
    %121 = vector.broadcast %120 : vector<1x32xf32> to vector<16x32xf32>
    %122 = arith.addf %117, %121 : vector<16x32xf32>
    %123 = arith.addf %100, %122 : vector<16x32xf32>
    %124 = arith.index_cast %arg1 : i32 to index
    %c0_41 = arith.constant 0 : index
    %c0_42 = arith.constant 0 : index
    %125 = vector.load %arg14[%124, %c0_41, %c0_42] : memref<2x1x32xf32, #tpu.memory_space<vmem>>, vector<1x1x32xf32>
    %126 = vector.shape_cast %125 : vector<1x1x32xf32> to vector<1x32xf32>
    %127 = arith.index_cast %arg1 : i32 to index
    %c0_43 = arith.constant 0 : index
    %c0_44 = arith.constant 0 : index
    %128 = vector.load %arg15[%127, %c0_43, %c0_44] : memref<2x1x32xf32, #tpu.memory_space<vmem>>, vector<1x1x32xf32>
    %129 = vector.shape_cast %128 : vector<1x1x32xf32> to vector<1x32xf32>
    %cst_45 = arith.constant dense<0.000000e+00> : vector<16xf32>
    %130 = vector.multi_reduction <add>, %123, %cst_45 [1] : vector<16x32xf32> to vector<16xf32>
    %131 = vector.shape_cast %130 : vector<16xf32> to vector<16x1xf32>
    %cst_46 = arith.constant 3.200000e+01 : f32
    %132 = vector.broadcast %cst_46 : f32 to vector<16x1xf32>
    %133 = arith.divf %131, %132 : vector<16x1xf32>
    %134 = vector.broadcast %133 : vector<16x1xf32> to vector<16x32xf32>
    %135 = arith.subf %123, %134 : vector<16x32xf32>
    %136 = arith.mulf %135, %135 : vector<16x32xf32>
    %cst_47 = arith.constant dense<0.000000e+00> : vector<16xf32>
    %137 = vector.multi_reduction <add>, %136, %cst_47 [1] : vector<16x32xf32> to vector<16xf32>
    %138 = vector.shape_cast %137 : vector<16xf32> to vector<16x1xf32>
    %cst_48 = arith.constant 3.200000e+01 : f32
    %139 = vector.broadcast %cst_48 : f32 to vector<16x1xf32>
    %140 = arith.divf %138, %139 : vector<16x1xf32>
    %cst_49 = arith.constant 9.99999974E-6 : f32
    %141 = vector.broadcast %cst_49 : f32 to vector<16x1xf32>
    %142 = arith.addf %140, %141 : vector<16x1xf32>
    %143 = math.rsqrt %142 : vector<16x1xf32>
    %144 = vector.broadcast %143 : vector<16x1xf32> to vector<16x32xf32>
    %145 = arith.mulf %135, %144 : vector<16x32xf32>
    %146 = vector.broadcast %126 : vector<1x32xf32> to vector<16x32xf32>
    %147 = arith.mulf %145, %146 : vector<16x32xf32>
    %148 = vector.broadcast %129 : vector<1x32xf32> to vector<16x32xf32>
    %149 = arith.addf %147, %148 : vector<16x32xf32>
    %c0_50 = arith.constant 0 : index
    %c0_51 = arith.constant 0 : index
    %150 = vector.load %arg17[%c0_50, %c0_51] : memref<16x32xf32, #tpu.memory_space<vmem>>, vector<16x32xf32>
    tpu.vector_store %arg17[%c0_50, %c0_51], %149 {strides = array<i32>} : memref<16x32xf32, #tpu.memory_space<vmem>>, vector<16x32xf32>,
    %c1_i32 = arith.constant 1 : i32
    %151 = arith.cmpi eq, %arg1, %c1_i32 : i32
    %152 = arith.extui %151 : i1 to i32
    %c0_i32_52 = arith.constant 0 : i32
    %153 = arith.cmpi ne, %152, %c0_i32_52 : i32
    scf.if %153 {
      %154 = vector.shape_cast %149 : vector<16x32xf32> to vector<2x8x32xf32>
      %c0_53 = arith.constant 0 : index
      %c0_54 = arith.constant 0 : index
      %c0_55 = arith.constant 0 : index
      %155 = vector.load %arg16[%c0_53, %c0_54, %c0_55] : memref<2x8x32xf32, #tpu.memory_space<vmem>>, vector<2x8x32xf32>
      tpu.vector_store %arg16[%c0_53, %c0_54, %c0_55], %154 {strides = array<i32>} : memref<2x8x32xf32, #tpu.memory_space<vmem>>, vector<2x8x32xf32>,
    } else {
    }
    return
  }
  func.func @transform_0(%arg0: i32, %arg1: i32) -> (i32, i32, i32) {
    %c0_i32 = arith.constant 0 : i32
    %c0_i32_0 = arith.constant 0 : i32
    %c0_i32_1 = arith.constant 0 : i32
    return %arg0, %c0_i32, %c0_i32_0 : i32, i32, i32
  }
  func.func @transform_1(%arg0: i32, %arg1: i32) -> (i32, i32, i32) {
    %c0_i32 = arith.constant 0 : i32
    %c0_i32_0 = arith.constant 0 : i32
    %c0_i32_1 = arith.constant 0 : i32
    %c0_i32_2 = arith.constant 0 : i32
    return %c0_i32, %c0_i32_0, %c0_i32_1 : i32, i32, i32
  }
  func.func @transform_2(%arg0: i32, %arg1: i32) -> (i32, i32, i32) {
    %c0_i32 = arith.constant 0 : i32
    %c0_i32_0 = arith.constant 0 : i32
    %c0_i32_1 = arith.constant 0 : i32
    %c0_i32_2 = arith.constant 0 : i32
    return %c0_i32, %c0_i32_0, %c0_i32_1 : i32, i32, i32
  }
  func.func @transform_3(%arg0: i32, %arg1: i32) -> (i32, i32, i32) {
    %c0_i32 = arith.constant 0 : i32
    %c0_i32_0 = arith.constant 0 : i32
    %c0_i32_1 = arith.constant 0 : i32
    %c0_i32_2 = arith.constant 0 : i32
    return %c0_i32, %c0_i32_0, %c0_i32_1 : i32, i32, i32
  }
  func.func @transform_4(%arg0: i32, %arg1: i32) -> (i32, i32, i32) {
    %c0_i32 = arith.constant 0 : i32
    %c0_i32_0 = arith.constant 0 : i32
    %c0_i32_1 = arith.constant 0 : i32
    %c0_i32_2 = arith.constant 0 : i32
    return %c0_i32, %c0_i32_0, %c0_i32_1 : i32, i32, i32
  }
  func.func @transform_5(%arg0: i32, %arg1: i32) -> (i32, i32, i32) {
    %c0_i32 = arith.constant 0 : i32
    %c0_i32_0 = arith.constant 0 : i32
    %c0_i32_1 = arith.constant 0 : i32
    %c0_i32_2 = arith.constant 0 : i32
    return %c0_i32, %c0_i32_0, %c0_i32_1 : i32, i32, i32
  }
  func.func @transform_6(%arg0: i32, %arg1: i32) -> (i32, i32, i32) {
    %c0_i32 = arith.constant 0 : i32
    %c0_i32_0 = arith.constant 0 : i32
    %c0_i32_1 = arith.constant 0 : i32
    %c0_i32_2 = arith.constant 0 : i32
    return %c0_i32, %c0_i32_0, %c0_i32_1 : i32, i32, i32
  }
  func.func @transform_7(%arg0: i32, %arg1: i32) -> (i32, i32, i32) {
    %c0_i32 = arith.constant 0 : i32
    %c0_i32_0 = arith.constant 0 : i32
    %c0_i32_1 = arith.constant 0 : i32
    %c0_i32_2 = arith.constant 0 : i32
    return %c0_i32, %c0_i32_0, %c0_i32_1 : i32, i32, i32
  }
  func.func @transform_8(%arg0: i32, %arg1: i32) -> (i32, i32, i32) {
    %c0_i32 = arith.constant 0 : i32
    %c0_i32_0 = arith.constant 0 : i32
    %c0_i32_1 = arith.constant 0 : i32
    %c0_i32_2 = arith.constant 0 : i32
    return %c0_i32, %c0_i32_0, %c0_i32_1 : i32, i32, i32
  }
  func.func @transform_9(%arg0: i32, %arg1: i32) -> (i32, i32, i32) {
    %c0_i32 = arith.constant 0 : i32
    %c0_i32_0 = arith.constant 0 : i32
    %c0_i32_1 = arith.constant 0 : i32
    %c0_i32_2 = arith.constant 0 : i32
    return %c0_i32, %c0_i32_0, %c0_i32_1 : i32, i32, i32
  }
  func.func @transform_10(%arg0: i32, %arg1: i32) -> (i32, i32, i32) {
    %c0_i32 = arith.constant 0 : i32
    %c0_i32_0 = arith.constant 0 : i32
    %c0_i32_1 = arith.constant 0 : i32
    %c0_i32_2 = arith.constant 0 : i32
    return %c0_i32, %c0_i32_0, %c0_i32_1 : i32, i32, i32
  }
  func.func @transform_11(%arg0: i32, %arg1: i32) -> (i32, i32, i32) {
    %c0_i32 = arith.constant 0 : i32
    %c0_i32_0 = arith.constant 0 : i32
    %c0_i32_1 = arith.constant 0 : i32
    %c0_i32_2 = arith.constant 0 : i32
    return %c0_i32, %c0_i32_0, %c0_i32_1 : i32, i32, i32
  }
  func.func @transform_12(%arg0: i32, %arg1: i32) -> (i32, i32, i32) {
    %c0_i32 = arith.constant 0 : i32
    %c0_i32_0 = arith.constant 0 : i32
    %c0_i32_1 = arith.constant 0 : i32
    %c0_i32_2 = arith.constant 0 : i32
    return %c0_i32, %c0_i32_0, %c0_i32_1 : i32, i32, i32
  }
  func.func @transform_13(%arg0: i32, %arg1: i32) -> (i32, i32, i32) {
    %c0_i32 = arith.constant 0 : i32
    %c0_i32_0 = arith.constant 0 : i32
    %c0_i32_1 = arith.constant 0 : i32
    %c0_i32_2 = arith.constant 0 : i32
    return %c0_i32, %c0_i32_0, %c0_i32_1 : i32, i32, i32
  }
  func.func @transform_14(%arg0: i32, %arg1: i32) -> (i32, i32, i32) {
    %c0_i32 = arith.constant 0 : i32
    %c0_i32_0 = arith.constant 0 : i32
    %c0_i32_1 = arith.constant 0 : i32
    return %arg0, %c0_i32, %c0_i32_0 : i32, i32, i32
  }
}

</mosaic_0001>

<llo_original>
// kernel: tpu_custom_call.1
$region0: #{tpu_custom_call.1}
  #allocation0 [shape = 'u32[]', space=smem, size = 0x4, offset = 0x4, fixed_abs, tag = 'smem constant byte address 0x4 - core index']
  #allocation1 [shape = 'u32[72,128]{1,0:T(1,128)}', space=vmem, size = 0x9000, scoped, tag = 'internal scratch']
  #allocation2 [shape = 'f32[16,32]{1,0:T(8,128)}', space=vmem, size = 0x2000, scoped, tag = 'scratch operand']
  %s0 = inlined_call_operand.vmem [shape: f32[2,8,32], index: 0, kind: input, shape index: {}]
  %s1 = inlined_call_operand.vmem [shape: f32[1,8,32], index: 1, kind: input, shape index: {}]
  %s2 = inlined_call_operand.vmem [shape: bf16[2,32,96], index: 2, kind: input, shape index: {}]
  %s3 = inlined_call_operand.vmem [shape: f32[2,1,96], index: 3, kind: input, shape index: {}]
  %s4 = inlined_call_operand.vmem [shape: bf16[2,32,32], index: 4, kind: input, shape index: {}]
  %s5 = inlined_call_operand.vmem [shape: f32[2,1,32], index: 5, kind: input, shape index: {}]
  %s6 = inlined_call_operand.vmem [shape: f32[2,1,32], index: 6, kind: input, shape index: {}]
  %s7 = inlined_call_operand.vmem [shape: f32[2,1,32], index: 7, kind: input, shape index: {}]
  %s8 = inlined_call_operand.vmem [shape: bf16[2,32,128], index: 8, kind: input, shape index: {}]
  %s9 = inlined_call_operand.vmem [shape: f32[2,1,128], index: 9, kind: input, shape index: {}]
  %s10 = inlined_call_operand.vmem [shape: bf16[2,128,32], index: 10, kind: input, shape index: {}]
  %s11 = inlined_call_operand.vmem [shape: f32[2,1,32], index: 11, kind: input, shape index: {}]
  %s12 = inlined_call_operand.vmem [shape: f32[2,1,32], index: 12, kind: input, shape index: {}]
  %s13 = inlined_call_operand.vmem [shape: f32[2,1,32], index: 13, kind: input, shape index: {}]
  %s14 = inlined_call_operand.hbm [shape: f32[2,8,32], index: 14, kind: output, shape index: {}]
  %s15 = sld [smem:[#allocation0]]
  $region97: #{tpu_custom_call.1} parent=0
    _
  %s17 = ssub.s32 1, %s15
  %s18 = scalar_select 0, %s17, %s15
  $region1: #{tpu_custom_call.1} parent=0
    #allocation3 [shape = 'u8[8192]{0}', space=vmem, size = 0x2000, scoped, tag = 'output window, operand 0, single buffered']
    #allocation4 [shape = 's32[2]{0}', space=sflag, size = 0x8, scoped, tag = 'scoped memory for tpu_custom_call.1']
    %19 = vsyncpa [#allocation4], 0
    loop: start=0, step=1, limit=4
    $region2: #{tpu_custom_call.1} parent=1 // loop_pre_header
      _
    $region3: #{tpu_custom_call.1} parent=1 // loop_header
      %s21 = sphi 0, %s25
      %p22 = scmp.ge.s32.totalorder %s21, 4
      %s28 = sphi 0, %s40
      %s29 = sphi 0, %s36
      %s30 = sphi 0, %s28
      %s31 = sphi 0, %s29
      %s32 = sphi 0, %s30
      %s33 = sphi 0, %s31
      %s43 = sphi 0, %s45
      %s46 = sphi 0, %s43
      %s47 = sphi 0, %s46
      %s63 = sphi 0, %s47
      %s67 = sphi 0, %s67
      %s69 = sphi 0, %s67
      %s70 = sphi 0, %s69
      %s84 = sphi 0, %s70
      %s88 = sphi 0, %s88
      %s90 = sphi 0, %s88
      %s91 = sphi 0, %s90
      %s105 = sphi 0, %s91
      %s109 = sphi 0, %s109
      %s111 = sphi 0, %s109
      %s112 = sphi 0, %s111
      %s126 = sphi 0, %s112
      %s130 = sphi 0, %s130
      %s132 = sphi 0, %s130
      %s133 = sphi 0, %s132
      %s147 = sphi 0, %s133
      %s151 = sphi 0, %s151
      %s153 = sphi 0, %s151
      %s154 = sphi 0, %s153
      %s168 = sphi 0, %s154
      %s172 = sphi 0, %s172
      %s174 = sphi 0, %s172
      %s175 = sphi 0, %s174
      %s189 = sphi 0, %s175
      %s193 = sphi 0, %s193
      %s195 = sphi 0, %s193
      %s196 = sphi 0, %s195
      %s210 = sphi 0, %s196
      %s214 = sphi 0, %s214
      %s216 = sphi 0, %s214
      %s217 = sphi 0, %s216
      %s231 = sphi 0, %s217
      %s235 = sphi 0, %s235
      %s237 = sphi 0, %s235
      %s238 = sphi 0, %s237
      %s252 = sphi 0, %s238
      %s256 = sphi 0, %s256
      %s258 = sphi 0, %s256
      %s259 = sphi 0, %s258
      %s273 = sphi 0, %s259
      %s277 = sphi 0, %s277
      %s279 = sphi 0, %s277
      %s280 = sphi 0, %s279
      %s294 = sphi 0, %s280
      %s298 = sphi 0, %s298
      %s300 = sphi 0, %s298
      %s301 = sphi 0, %s300
      %s315 = sphi 0, %s301
      %s319 = sphi 0, %s319
      %s321 = sphi 0, %s319
      %s322 = sphi 0, %s321
      %s336 = sphi 0, %s322
      %s342 = sphi 0, %s344
      %s345 = sphi 0, %s342
      %s346 = sphi 0, %s345
      %s362 = sphi 0, %s346
    $region4: #{tpu_custom_call.1} parent=1 // loop_header_branch
      %24 = sbr.rel (%p22) target = $region8
    $region5: #{tpu_custom_call.1} parent=1 // loop_body
      %s26 = ssub.s32 %s21, 1
      %s27 = ssub.s32 %s21, 2
      %s34 = sadd.s32 1, %s29
      %p35 = scmp.ge.s32.totalorder %s34, 2
      %s36 = scalar_select %p35, 0, %s34
      %s37 = sadd.s32 1, %s28
      %s38 = scalar_select %p35, %s37, %s28
      %p39 = scmp.ge.s32.totalorder %s38, 1
      %s40 = scalar_select %p39, 0, %s38
      %s41 = ssub.s32 %s28, %s40
      %p42 = scmp.eq.s32.totalorder %s41, 0
      %s44 = sadd.s32 %s43, 1
      %s45 = scalar_select %p42, %s43, %s44
      %p48 = pneg %p42
      %p49 = scmp.eq.s32.totalorder %s21, 1
      %p50 = por %p48, %p49
      %p51 = scmp.ne.s32.totalorder %s43, %s46
      %p52 = scmp.eq.s32.totalorder %s21, 0
      %p53 = por %p51, %p52
      %p54 = scmp.ne.s32.totalorder %s43, %s46
      %p55 = scmp.eq.s32.totalorder %s26, 1
      %p56 = por %p54, %p55
      %p57 = scmp.ne.s32.totalorder %s46, %s47
      %p58 = scmp.eq.s32.totalorder %s26, 0
      %p59 = por %p57, %p58
      %p60 = scmp.ne.s32.totalorder %s46, %s47
      %p61 = scmp.eq.s32.totalorder %s27, 1
      %p62 = por %p60, %p61
      %p64 = scmp.ne.s32.totalorder %s47, %s63
      %p65 = scmp.eq.s32.totalorder %s27, 0
      %p66 = por %p64, %p65
      %s68 = sadd.s32 %s67, 1
      %p71 = scmp.eq.s32.totalorder %s21, 1
      %p72 = scmp.ne.s32.totalorder %s67, %s69
      %p73 = scmp.eq.s32.totalorder %s21, 0
      %p74 = por %p72, %p73
      %p75 = scmp.ne.s32.totalorder %s67, %s69
      %p76 = scmp.eq.s32.totalorder %s26, 1
      %p77 = por %p75, %p76
      %p78 = scmp.ne.s32.totalorder %s69, %s70
      %p79 = scmp.eq.s32.totalorder %s26, 0
      %p80 = por %p78, %p79
      %p81 = scmp.ne.s32.totalorder %s69, %s70
      %p82 = scmp.eq.s32.totalorder %s27, 1
      %p83 = por %p81, %p82
      %p85 = scmp.ne.s32.totalorder %s70, %s84
      %p86 = scmp.eq.s32.totalorder %s27, 0
      %p87 = por %p85, %p86
      %s89 = sadd.s32 %s88, 1
      %p92 = scmp.eq.s32.totalorder %s21, 1
      %p93 = scmp.ne.s32.totalorder %s88, %s90
      %p94 = scmp.eq.s32.totalorder %s21, 0
      %p95 = por %p93, %p94
      %p96 = scmp.ne.s32.totalorder %s88, %s90
      %p97 = scmp.eq.s32.totalorder %s26, 1
      %p98 = por %p96, %p97
      %p99 = scmp.ne.s32.totalorder %s90, %s91
      %p100 = scmp.eq.s32.totalorder %s26, 0
      %p101 = por %p99, %p100
      %p102 = scmp.ne.s32.totalorder %s90, %s91
      %p103 = scmp.eq.s32.totalorder %s27, 1
      %p104 = por %p102, %p103
      %p106 = scmp.ne.s32.totalorder %s91, %s105
      %p107 = scmp.eq.s32.totalorder %s27, 0
      %p108 = por %p106, %p107
      %s110 = sadd.s32 %s109, 1
      %p113 = scmp.eq.s32.totalorder %s21, 1
      %p114 = scmp.ne.s32.totalorder %s109, %s111
      %p115 = scmp.eq.s32.totalorder %s21, 0
      %p116 = por %p114, %p115
      %p117 = scmp.ne.s32.totalorder %s109, %s111
      %p118 = scmp.eq.s32.totalorder %s26, 1
      %p119 = por %p117, %p118
      %p120 = scmp.ne.s32.totalorder %s111, %s112
      %p121 = scmp.eq.s32.totalorder %s26, 0
      %p122 = por %p120, %p121
      %p123 = scmp.ne.s32.totalorder %s111, %s112
      %p124 = scmp.eq.s32.totalorder %s27, 1
      %p125 = por %p123, %p124
      %p127 = scmp.ne.s32.totalorder %s112, %s126
      %p128 = scmp.eq.s32.totalorder %s27, 0
      %p129 = por %p127, %p128
      %s131 = sadd.s32 %s130, 1
      %p134 = scmp.eq.s32.totalorder %s21, 1
      %p135 = scmp.ne.s32.totalorder %s130, %s132
      %p136 = scmp.eq.s32.totalorder %s21, 0
      %p137 = por %p135, %p136
      %p138 = scmp.ne.s32.totalorder %s130, %s132
      %p139 = scmp.eq.s32.totalorder %s26, 1
      %p140 = por %p138, %p139
      %p141 = scmp.ne.s32.totalorder %s132, %s133
      %p142 = scmp.eq.s32.totalorder %s26, 0
      %p143 = por %p141, %p142
      %p144 = scmp.ne.s32.totalorder %s132, %s133
      %p145 = scmp.eq.s32.totalorder %s27, 1
      %p146 = por %p144, %p145
      %p148 = scmp.ne.s32.totalorder %s133, %s147
      %p149 = scmp.eq.s32.totalorder %s27, 0
      %p150 = por %p148, %p149
      %s152 = sadd.s32 %s151, 1
      %p155 = scmp.eq.s32.totalorder %s21, 1
      %p156 = scmp.ne.s32.totalorder %s151, %s153
      %p157 = scmp.eq.s32.totalorder %s21, 0
      %p158 = por %p156, %p157
      %p159 = scmp.ne.s32.totalorder %s151, %s153
      %p160 = scmp.eq.s32.totalorder %s26, 1
      %p161 = por %p159, %p160
      %p162 = scmp.ne.s32.totalorder %s153, %s154
      %p163 = scmp.eq.s32.totalorder %s26, 0
      %p164 = por %p162, %p163
      %p165 = scmp.ne.s32.totalorder %s153, %s154
      %p166 = scmp.eq.s32.totalorder %s27, 1
      %p167 = por %p165, %p166
      %p169 = scmp.ne.s32.totalorder %s154, %s168
      %p170 = scmp.eq.s32.totalorder %s27, 0
      %p171 = por %p169, %p170
      %s173 = sadd.s32 %s172, 1
      %p176 = scmp.eq.s32.totalorder %s21, 1
      %p177 = scmp.ne.s32.totalorder %s172, %s174
      %p178 = scmp.eq.s32.totalorder %s21, 0
      %p179 = por %p177, %p178
      %p180 = scmp.ne.s32.totalorder %s172, %s174
      %p181 = scmp.eq.s32.totalorder %s26, 1
      %p182 = por %p180, %p181
      %p183 = scmp.ne.s32.totalorder %s174, %s175
      %p184 = scmp.eq.s32.totalorder %s26, 0
      %p185 = por %p183, %p184
      %p186 = scmp.ne.s32.totalorder %s174, %s175
      %p187 = scmp.eq.s32.totalorder %s27, 1
      %p188 = por %p186, %p187
      %p190 = scmp.ne.s32.totalorder %s175, %s189
      %p191 = scmp.eq.s32.totalorder %s27, 0
      %p192 = por %p190, %p191
      %s194 = sadd.s32 %s193, 1
      %p197 = scmp.eq.s32.totalorder %s21, 1
      %p198 = scmp.ne.s32.totalorder %s193, %s195
      %p199 = scmp.eq.s32.totalorder %s21, 0
      %p200 = por %p198, %p199
      %p201 = scmp.ne.s32.totalorder %s193, %s195
      %p202 = scmp.eq.s32.totalorder %s26, 1
      %p203 = por %p201, %p202
      %p204 = scmp.ne.s32.totalorder %s195, %s196
      %p205 = scmp.eq.s32.totalorder %s26, 0
      %p206 = por %p204, %p205
      %p207 = scmp.ne.s32.totalorder %s195, %s196
      %p208 = scmp.eq.s32.totalorder %s27, 1
      %p209 = por %p207, %p208
      %p211 = scmp.ne.s32.totalorder %s196, %s210
      %p212 = scmp.eq.s32.totalorder %s27, 0
      %p213 = por %p211, %p212
      %s215 = sadd.s32 %s214, 1
      %p218 = scmp.eq.s32.totalorder %s21, 1
      %p219 = scmp.ne.s32.totalorder %s214, %s216
      %p220 = scmp.eq.s32.totalorder %s21, 0
      %p221 = por %p219, %p220
      %p222 = scmp.ne.s32.totalorder %s214, %s216
      %p223 = scmp.eq.s32.totalorder %s26, 1
      %p224 = por %p222, %p223
      %p225 = scmp.ne.s32.totalorder %s216, %s217
      %p226 = scmp.eq.s32.totalorder %s26, 0
      %p227 = por %p225, %p226
      %p228 = scmp.ne.s32.totalorder %s216, %s217
      %p229 = scmp.eq.s32.totalorder %s27, 1
      %p230 = por %p228, %p229
      %p232 = scmp.ne.s32.totalorder %s217, %s231
      %p233 = scmp.eq.s32.totalorder %s27, 0
      %p234 = por %p232, %p233
      %s236 = sadd.s32 %s235, 1
      %p239 = scmp.eq.s32.totalorder %s21, 1
      %p240 = scmp.ne.s32.totalorder %s235, %s237
      %p241 = scmp.eq.s32.totalorder %s21, 0
      %p242 = por %p240, %p241
      %p243 = scmp.ne.s32.totalorder %s235, %s237
      %p244 = scmp.eq.s32.totalorder %s26, 1
      %p245 = por %p243, %p244
      %p246 = scmp.ne.s32.totalorder %s237, %s238
      %p247 = scmp.eq.s32.totalorder %s26, 0
      %p248 = por %p246, %p247
      %p249 = scmp.ne.s32.totalorder %s237, %s238
      %p250 = scmp.eq.s32.totalorder %s27, 1
      %p251 = por %p249, %p250
      %p253 = scmp.ne.s32.totalorder %s238, %s252
      %p254 = scmp.eq.s32.totalorder %s27, 0
      %p255 = por %p253, %p254
      %s257 = sadd.s32 %s256, 1
      %p260 = scmp.eq.s32.totalorder %s21, 1
      %p261 = scmp.ne.s32.totalorder %s256, %s258
      %p262 = scmp.eq.s32.totalorder %s21, 0
      %p263 = por %p261, %p262
      %p264 = scmp.ne.s32.totalorder %s256, %s258
      %p265 = scmp.eq.s32.totalorder %s26, 1
      %p266 = por %p264, %p265
      %p267 = scmp.ne.s32.totalorder %s258, %s259
      %p268 = scmp.eq.s32.totalorder %s26, 0
      %p269 = por %p267, %p268
      %p270 = scmp.ne.s32.totalorder %s258, %s259
      %p271 = scmp.eq.s32.totalorder %s27, 1
      %p272 = por %p270, %p271
      %p274 = scmp.ne.s32.totalorder %s259, %s273
      %p275 = scmp.eq.s32.totalorder %s27, 0
      %p276 = por %p274, %p275
      %s278 = sadd.s32 %s277, 1
      %p281 = scmp.eq.s32.totalorder %s21, 1
      %p282 = scmp.ne.s32.totalorder %s277, %s279
      %p283 = scmp.eq.s32.totalorder %s21, 0
      %p284 = por %p282, %p283
      %p285 = scmp.ne.s32.totalorder %s277, %s279
      %p286 = scmp.eq.s32.totalorder %s26, 1
      %p287 = por %p285, %p286
      %p288 = scmp.ne.s32.totalorder %s279, %s280
      %p289 = scmp.eq.s32.totalorder %s26, 0
      %p290 = por %p288, %p289
      %p291 = scmp.ne.s32.totalorder %s279, %s280
      %p292 = scmp.eq.s32.totalorder %s27, 1
      %p293 = por %p291, %p292
      %p295 = scmp.ne.s32.totalorder %s280, %s294
      %p296 = scmp.eq.s32.totalorder %s27, 0
      %p297 = por %p295, %p296
      %s299 = sadd.s32 %s298, 1
      %p302 = scmp.eq.s32.totalorder %s21, 1
      %p303 = scmp.ne.s32.totalorder %s298, %s300
      %p304 = scmp.eq.s32.totalorder %s21, 0
      %p305 = por %p303, %p304
      %p306 = scmp.ne.s32.totalorder %s298, %s300
      %p307 = scmp.eq.s32.totalorder %s26, 1
      %p308 = por %p306, %p307
      %p309 = scmp.ne.s32.totalorder %s300, %s301
      %p310 = scmp.eq.s32.totalorder %s26, 0
      %p311 = por %p309, %p310
      %p312 = scmp.ne.s32.totalorder %s300, %s301
      %p313 = scmp.eq.s32.totalorder %s27, 1
      %p314 = por %p312, %p313
      %p316 = scmp.ne.s32.totalorder %s301, %s315
      %p317 = scmp.eq.s32.totalorder %s27, 0
      %p318 = por %p316, %p317
      %s320 = sadd.s32 %s319, 1
      %p323 = scmp.eq.s32.totalorder %s21, 1
      %p324 = scmp.ne.s32.totalorder %s319, %s321
      %p325 = scmp.eq.s32.totalorder %s21, 0
      %p326 = por %p324, %p325
      %p327 = scmp.ne.s32.totalorder %s319, %s321
      %p328 = scmp.eq.s32.totalorder %s26, 1
      %p329 = por %p327, %p328
      %p330 = scmp.ne.s32.totalorder %s321, %s322
      %p331 = scmp.eq.s32.totalorder %s26, 0
      %p332 = por %p330, %p331
      %p333 = scmp.ne.s32.totalorder %s321, %s322
      %p334 = scmp.eq.s32.totalorder %s27, 1
      %p335 = por %p333, %p334
      %p337 = scmp.ne.s32.totalorder %s322, %s336
      %p338 = scmp.eq.s32.totalorder %s27, 0
      %p339 = por %p337, %p338
      %s340 = ssub.s32 %s28, %s40
      %p341 = scmp.eq.s32.totalorder %s340, 0
      %s343 = sadd.s32 %s342, 1
      %s344 = scalar_select %p341, %s342, %s343
      %p347 = pneg %p341
      %p348 = scmp.eq.s32.totalorder %s21, 1
      %p349 = por %p347, %p348
      %p350 = scmp.ne.s32.totalorder %s342, %s345
      %p351 = scmp.eq.s32.totalorder %s21, 0
      %p352 = por %p350, %p351
      %p353 = scmp.ne.s32.totalorder %s342, %s345
      %p354 = scmp.eq.s32.totalorder %s26, 1
      %p355 = por %p353, %p354
      %p356 = scmp.ne.s32.totalorder %s345, %s346
      %p357 = scmp.eq.s32.totalorder %s26, 0
      %p358 = por %p356, %p357
      %p359 = scmp.ne.s32.totalorder %s345, %s346
      %p360 = scmp.eq.s32.totalorder %s27, 1
      %p361 = por %p359, %p360
      %p363 = scmp.ne.s32.totalorder %s346, %s362
      %p364 = scmp.eq.s32.totalorder %s27, 0
      %p365 = por %p363, %p364
      %p366 = scmp.le.s32.totalorder 1, %s21
      %p367 = scmp.lt.s32.totalorder %s21, 3
      %p368 = pnand %p366, %p367
      %p369 = pneg %p368
      // Predicated region
      $region9: #{tpu_custom_call.1} parent=5 // pred_check
        _
      $region10: #{tpu_custom_call.1} parent=5 // pred_check_branch
        %371 = sbr.rel (%p368) target = $region12
      $region11: #{tpu_custom_call.1} parent=5 // pred_region
        %s372 = ssub.s32 %s21, 1
        // Predicated region
        $region13: #{tpu_custom_call.1} parent=11 // pred_check
          %p373 = pneg %p59
        $region14: #{tpu_custom_call.1} parent=11 // pred_check_branch
          %375 = sbr.rel (%p373) target = $region16
        $region15: #{tpu_custom_call.1} parent=11 // pred_region
          %s376 = smul.u32 2, %s30
          %p377 = scmp.lt.s32.totalorder %s376, 1
          %s378 = scalar_select %p377, %s376, 1
          %s379 = smul.addr %s378, 8
          %s380 = scalar_lea.vmem %s0, %s379
          %s381 = smul.u32 2, %s30
        $region16: #{tpu_custom_call.1} parent=11 // pred_fallthru
          _
        // Predicated region
        $region17: #{tpu_custom_call.1} parent=11 // pred_check
          %p382 = pneg %p80
        $region18: #{tpu_custom_call.1} parent=11 // pred_check_branch
          %384 = sbr.rel (%p382) target = $region20
        $region19: #{tpu_custom_call.1} parent=11 // pred_region
          _
        $region20: #{tpu_custom_call.1} parent=11 // pred_fallthru
          _
        // Predicated region
        $region21: #{tpu_custom_call.1} parent=11 // pred_check
          %p385 = pneg %p101
        $region22: #{tpu_custom_call.1} parent=11 // pred_check_branch
          %387 = sbr.rel (%p385) target = $region24
        $region23: #{tpu_custom_call.1} parent=11 // pred_region
          _
        $region24: #{tpu_custom_call.1} parent=11 // pred_fallthru
          _
        // Predicated region
        $region25: #{tpu_custom_call.1} parent=11 // pred_check
          %p388 = pneg %p122
        $region26: #{tpu_custom_call.1} parent=11 // pred_check_branch
          %390 = sbr.rel (%p388) target = $region28
        $region27: #{tpu_custom_call.1} parent=11 // pred_region
          _
        $region28: #{tpu_custom_call.1} parent=11 // pred_fallthru
          _
        // Predicated region
        $region29: #{tpu_custom_call.1} parent=11 // pred_check
          %p391 = pneg %p143
        $region30: #{tpu_custom_call.1} parent=11 // pred_check_branch
          %393 = sbr.rel (%p391) target = $region32
        $region31: #{tpu_custom_call.1} parent=11 // pred_region
          _
        $region32: #{tpu_custom_call.1} parent=11 // pred_fallthru
          _
        // Predicated region
        $region33: #{tpu_custom_call.1} parent=11 // pred_check
          %p394 = pneg %p164
        $region34: #{tpu_custom_call.1} parent=11 // pred_check_branch
          %396 = sbr.rel (%p394) target = $region36
        $region35: #{tpu_custom_call.1} parent=11 // pred_region
          _
        $region36: #{tpu_custom_call.1} parent=11 // pred_fallthru
          _
        // Predicated region
        $region37: #{tpu_custom_call.1} parent=11 // pred_check
          %p397 = pneg %p185
        $region38: #{tpu_custom_call.1} parent=11 // pred_check_branch
          %399 = sbr.rel (%p397) target = $region40
        $region39: #{tpu_custom_call.1} parent=11 // pred_region
          _
        $region40: #{tpu_custom_call.1} parent=11 // pred_fallthru
          _
        // Predicated region
        $region41: #{tpu_custom_call.1} parent=11 // pred_check
          %p400 = pneg %p206
        $region42: #{tpu_custom_call.1} parent=11 // pred_check_branch
          %402 = sbr.rel (%p400) target = $region44
        $region43: #{tpu_custom_call.1} parent=11 // pred_region
          _
        $region44: #{tpu_custom_call.1} parent=11 // pred_fallthru
          _
        // Predicated region
        $region45: #{tpu_custom_call.1} parent=11 // pred_check
          %p403 = pneg %p227
        $region46: #{tpu_custom_call.1} parent=11 // pred_check_branch
          %405 = sbr.rel (%p403) target = $region48
        $region47: #{tpu_custom_call.1} parent=11 // pred_region
          _
        $region48: #{tpu_custom_call.1} parent=11 // pred_fallthru
          _
        // Predicated region
        $region49: #{tpu_custom_call.1} parent=11 // pred_check
          %p406 = pneg %p248
        $region50: #{tpu_custom_call.1} parent=11 // pred_check_branch
          %408 = sbr.rel (%p406) target = $region52
        $region51: #{tpu_custom_call.1} parent=11 // pred_region
          _
        $region52: #{tpu_custom_call.1} parent=11 // pred_fallthru
          _
        // Predicated region
        $region53: #{tpu_custom_call.1} parent=11 // pred_check
          %p409 = pneg %p269
        $region54: #{tpu_custom_call.1} parent=11 // pred_check_branch
          %411 = sbr.rel (%p409) target = $region56
        $region55: #{tpu_custom_call.1} parent=11 // pred_region
          _
        $region56: #{tpu_custom_call.1} parent=11 // pred_fallthru
          _
        // Predicated region
        $region57: #{tpu_custom_call.1} parent=11 // pred_check
          %p412 = pneg %p290
        $region58: #{tpu_custom_call.1} parent=11 // pred_check_branch
          %414 = sbr.rel (%p412) target = $region60
        $region59: #{tpu_custom_call.1} parent=11 // pred_region
          _
        $region60: #{tpu_custom_call.1} parent=11 // pred_fallthru
          _
        // Predicated region
        $region61: #{tpu_custom_call.1} parent=11 // pred_check
          %p415 = pneg %p311
        $region62: #{tpu_custom_call.1} parent=11 // pred_check_branch
          %417 = sbr.rel (%p415) target = $region64
        $region63: #{tpu_custom_call.1} parent=11 // pred_region
          _
        $region64: #{tpu_custom_call.1} parent=11 // pred_fallthru
          _
        // Predicated region
        $region65: #{tpu_custom_call.1} parent=11 // pred_check
          %p418 = pneg %p332
        $region66: #{tpu_custom_call.1} parent=11 // pred_check_branch
          %420 = sbr.rel (%p418) target = $region68
        $region67: #{tpu_custom_call.1} parent=11 // pred_region
          _
        $region68: #{tpu_custom_call.1} parent=11 // pred_fallthru
          _
      $region12: #{tpu_custom_call.1} parent=5 // pred_fallthru
        _
      %p421 = scmp.lt.s32.totalorder %s21, 2
      // Predicated region
      $region69: #{tpu_custom_call.1} parent=5 // pred_check
        %p422 = pneg %p421
      $region70: #{tpu_custom_call.1} parent=5 // pred_check_branch
        %424 = sbr.rel (%p422) target = $region72
      $region71: #{tpu_custom_call.1} parent=5 // pred_region
        _
      $region72: #{tpu_custom_call.1} parent=5 // pred_fallthru
        _
      %p425 = scmp.le.s32.totalorder 1, %s21
      %p426 = scmp.lt.s32.totalorder %s21, 3
      %p427 = pnand %p425, %p426
      %p428 = pneg %p427
      // Predicated region
      $region73: #{tpu_custom_call.1} parent=5 // pred_check
        _
      $region74: #{tpu_custom_call.1} parent=5 // pred_check_branch
        %430 = sbr.rel (%p427) target = $region76
      $region75: #{tpu_custom_call.1} parent=5 // pred_region
        %s431 = ssub.s32 %s21, 1
        %s432 = smul.u32 2, %s30
        %p433 = scmp.lt.s32.totalorder %s432, 1
        %s434 = scalar_select %p433, %s432, 1
        %s435 = smul.addr %s434, 8
        %s436 = scalar_lea.vmem %s0, %s435
        %p437 = pneg %p59
        %p438 = pneg %p56
        %p439 = pneg %p80
        %p440 = pneg %p77
        %p441 = pneg %p101
        %p442 = pneg %p98
        %p443 = pneg %p122
        %p444 = pneg %p119
        %p445 = pneg %p143
        %p446 = pneg %p140
        %p447 = pneg %p164
        %p448 = pneg %p161
        %p449 = pneg %p185
        %p450 = pneg %p182
        %p451 = pneg %p206
        %p452 = pneg %p203
        %p453 = pneg %p227
        %p454 = pneg %p224
        %p455 = pneg %p248
        %p456 = pneg %p245
        %p457 = pneg %p269
        %p458 = pneg %p266
        %p459 = pneg %p290
        %p460 = pneg %p287
        %p461 = pneg %p311
        %p462 = pneg %p308
        %p463 = pneg %p332
        %p464 = pneg %p329
        %p465 = pneg %p358
        %p466 = pneg %p355
        %s467 = smul.u32 2, %s30
        %p468 = scmp.lt.s32.totalorder %s467, 1
        %s469 = scalar_select %p468, %s467, 1
        %s470 = smul.addr %s469, 8
        %s471 = scalar_lea.vmem %s0, %s470
        %s472 = smul.u32 2, %s30
        %s473 = smul.u32 2, %s30
        %p475 = scmp.eq.s32.totalorder %s31, 0
        // Predicated region
        $region77: #{tpu_custom_call.1} parent=75 // pred_check
          %p476 = pneg %p475
        $region78: #{tpu_custom_call.1} parent=75 // pred_check_branch
          %478 = sbr.rel (%p476) target = $region80
        $region79: #{tpu_custom_call.1} parent=75 // pred_region
          %v479 = vld [vmem:[%s471] sm:$0xff]
          %v480 = vld [vmem:[%s471 + $0x8] sm:$0xff]
          %v481 = vld [vmem:[%s1] sm:$0xff]
          %v482 = vadd.f32 %v479, %v481
          %v483 = vadd.f32 %v480, %v481
          %vm484 = vcmask 261120
          %485 = vst.msk [vmem:[#allocation2] sm:$0xff] %vm484, %v482
          %486 = vst.msk [vmem:[#allocation2 + $0x8] sm:$0xff] %vm484, %v483
        $region80: #{tpu_custom_call.1} parent=75 // pred_fallthru
          _
        %v487 = vld [vmem:[#allocation2] sm:$0xff]
        %v488 = vld [vmem:[#allocation2 + $0x8] sm:$0xff]
        %v489 = vpack.c.bf16 %v488, %v487
        %s490 = smul.u32 %s31, 4
        %s491 = smul.addr %s490, 4
        %s492 = scalar_lea.vmem %s2, %s491
        %v493 = vld [vmem:[%s492] sm:$0xf]
        %v494 = vld [vmem:[%s492 + $0x4] sm:$0xf]
        %v495 = vld [vmem:[%s492 + $0x8] sm:$0xf]
        %v496 = vld [vmem:[%s492 + $0xc] sm:$0xf]
        %s497 = scalar_lea.vmem %s3, %s31
        %v498 = vld [vmem:[%s497] sm:$0x1]
        %v500 = vperm.slane %v498, 0
        %v506 = vunpack.c.l.b16 %v493
        %v507 = vunpack.c.l.b16 %v494
        %v508 = vunpack.c.l.b16 %v495
        %v509 = vunpack.c.l.b16 %v496
        %v510 = vpack.c.b16 %v507, %v506
        %v511 = vpack.c.b16 %v509, %v508
        %vm514 = vcmask 261120
        %v516 = vsel %vm514, %v489, 0
        %518 = vmatpush.bf16.msra.mxu0 0
        %519 = vmatpush.bf16.msra.mxu0 0
        %520 = vmatpush.bf16.msra.mxu0 0
        %521 = vmatpush.bf16.msra.mxu0 0
        %522 = vmatpush.bf16.msra.mxu0 0
        %523 = vmatpush.bf16.msra.mxu0 0
        %524 = vmatpush.bf16.msra.mxu0 %v511
        %525 = vmatpush.bf16.msra.mxu0 %v510
        %526 = vmatmul.bf16.gmra.mxu0 %v516
        %v527 = vpop.f32.mrf.mxu0
        %v528 = vadd.f32 %v500, %v527
        %v529 = vpop.f32.mrf.mxu0
        %v530 = vadd.f32 %v500, %v529
        %531 = vdwg.mxu0
        %v532 = vpack.c.bf16 %v528, %v528
        %v533 = vpack.c.bf16 %v530, %v530
        %s534 = smul.addr %s490, 4
        %s535 = scalar_lea.vmem %s4, %s534
        %v536 = vld [vmem:[%s535] sm:$0xf]
        %v537 = vld [vmem:[%s535 + $0x4] sm:$0xf]
        %v538 = vld [vmem:[%s535 + $0x8] sm:$0xf]
        %v539 = vld [vmem:[%s535 + $0xc] sm:$0xf]
        %s540 = scalar_lea.vmem %s5, %s31
        %v541 = vld [vmem:[%s540] sm:$0x1]
        %v543 = vperm.slane %v541, 0
        %v545 = vadd.f32 %v543, 0.0
        %v547 = vunpack.c.l.b16 %v532
        %v548 = vpack.c.b16 %v547, %v547
        %549 = vrot.lane.b32.xlu0 %v548, 96
        %v550 = vpop.permute.xlu0 %549
        %vm551 = vcmask 130048
        %v553 = vsel %vm551, %v532, 0
        %v556 = vsel %vm551, %v550, 0
        %558 = vmatpush.bf16.xpose.msra.mxu0 0
        %559 = vmatpush.bf16.xpose.msra.mxu0 0
        %560 = vmatpush.bf16.xpose.msra.mxu0 0
        %561 = vmatpush.bf16.xpose.msra.mxu0 0
        %562 = vmatpush.bf16.xpose.msra.mxu0 0
        %563 = vmatpush.bf16.xpose.msra.mxu0 0
        %564 = vmatpush.bf16.xpose.msra.mxu0 0
        %565 = vmatpush.bf16.xpose.msra.mxu0 %v556
        %566 = vmatmul.bf16.gmra.mxu0 %v553
        %v567 = vpop.f32.mrf.mxu0
        %v568 = vadd.f32 0.0, %v567
        %v569 = vpop.f32.mrf.mxu0
        %570 = vdwg.mxu0
        %v572 = vunpack.c.l.b16 %v533
        %v573 = vpack.c.b16 %v572, %v572
        %574 = vrot.lane.b32.xlu0 %v573, 96
        %v575 = vpop.permute.xlu0 %574
        %v577 = vsel %vm551, %v533, 0
        %v580 = vsel %vm551, %v575, 0
        %582 = vmatpush.bf16.xpose.msra.mxu0 0
        %583 = vmatpush.bf16.xpose.msra.mxu0 0
        %584 = vmatpush.bf16.xpose.msra.mxu0 0
        %585 = vmatpush.bf16.xpose.msra.mxu0 0
        %586 = vmatpush.bf16.xpose.msra.mxu0 0
        %587 = vmatpush.bf16.xpose.msra.mxu0 0
        %588 = vmatpush.bf16.xpose.msra.mxu0 0
        %589 = vmatpush.bf16.xpose.msra.mxu0 %v580
        %590 = vmatmul.bf16.gmra.mxu0 %v577
        %v591 = vpop.f32.mrf.mxu0
        %v592 = vadd.f32 0.0, %v591
        %v593 = vpop.f32.mrf.mxu0
        %594 = vdwg.mxu0
        %vm595 = vcmask 64512
        %v596 = vsel %vm595, %v568, -inf
        %597 = vmax.xlane.f32.xlu0 %v596
        %v598 = vpop.xlane.xlu0 %597
        %v599 = vsel %vm595, %v592, -inf
        %600 = vmax.xlane.f32.xlu0 %v599
        %v601 = vpop.xlane.xlu0 %600
        %v602 = vsub.f32 %v568, %v598
        %v603 = vsub.f32 %v592, %v601
        %v604 = vmul.f32 %v602, 1.442695
        %v605 = vpow.pop %v604
        %v606 = vmul.f32 %v603, 1.442695
        %v607 = vpow.pop %v606
        %v608 = vsel %vm595, %v605, 0.0
        %609 = vadd.xlane.f32.xlu0 %v608
        %v610 = vpop.xlane.xlu0 %609
        %v611 = vsel %vm595, %v607, 0.0
        %612 = vadd.xlane.f32.xlu0 %v611
        %v613 = vpop.xlane.xlu0 %612
        %v614 = vrcp.pop %v610
        %v615 = vrcp.pop %v613
        %v616 = vmul.f32 %v605, %v614
        %v617 = vmul.f32 %v607, %v615
        %v618 = vpack.c.bf16 %v616, %v616
        %v619 = vpack.c.bf16 %v617, %v617
        %620 = vrot.lane.b32.xlu0 %v548, 64
        %v621 = vpop.permute.xlu0 %620
        %v623 = vsel %vm595, %v618, 0
        %vm625 = vcmask 1043456
        %v627 = vsel %vm625, %v621, 0
        %629 = vmatpush.bf16.msra.mxu0 0
        %630 = vmatpush.bf16.msra.mxu0 0
        %631 = vmatpush.bf16.msra.mxu0 0
        %632 = vmatpush.bf16.msra.mxu0 0
        %633 = vmatpush.bf16.msra.mxu0 0
        %634 = vmatpush.bf16.msra.mxu0 0
        %635 = vmatpush.bf16.msra.mxu0 0
        %636 = vmatpush.bf16.msra.mxu0 %v627
        %637 = vmatmul.bf16.gmra.mxu0 %v623
        %v638 = vpop.f32.mrf.mxu0
        %v639 = vadd.f32 0.0, %v638
        %v640 = vpop.f32.mrf.mxu0
        %641 = vdwg.mxu0
        %642 = vrot.lane.b32.xlu0 %v573, 64
        %v643 = vpop.permute.xlu0 %642
        %v645 = vsel %vm595, %v619, 0
        %v648 = vsel %vm625, %v643, 0
        %650 = vmatpush.bf16.msra.mxu0 0
        %651 = vmatpush.bf16.msra.mxu0 0
        %652 = vmatpush.bf16.msra.mxu0 0
        %653 = vmatpush.bf16.msra.mxu0 0
        %654 = vmatpush.bf16.msra.mxu0 0
        %655 = vmatpush.bf16.msra.mxu0 0
        %656 = vmatpush.bf16.msra.mxu0 0
        %657 = vmatpush.bf16.msra.mxu0 %v648
        %658 = vmatmul.bf16.gmra.mxu0 %v645
        %v659 = vpop.f32.mrf.mxu0
        %v660 = vadd.f32 0.0, %v659
        %v661 = vpop.f32.mrf.mxu0
        %662 = vdwg.mxu0
        %v663 = vpack.c.bf16 %v660, %v639
        %v666 = vunpack.c.l.b16 %v536
        %v667 = vunpack.c.l.b16 %v537
        %v668 = vpack.c.b16 %v667, %v666
        %v671 = vsel %vm551, %v663, 0
        %673 = vmatpush.bf16.msra.mxu0 0
        %674 = vmatpush.bf16.msra.mxu0 0
        %675 = vmatpush.bf16.msra.mxu0 0
        %676 = vmatpush.bf16.msra.mxu0 0
        %677 = vmatpush.bf16.msra.mxu0 0
        %678 = vmatpush.bf16.msra.mxu0 0
        %679 = vmatpush.bf16.msra.mxu0 0
        %680 = vmatpush.bf16.msra.mxu0 %v668
        %681 = vmatmul.bf16.gmra.mxu0 %v671
        %v682 = vpop.f32.mrf.mxu0
        %v683 = vadd.f32 0.0, %v682
        %v684 = vpop.f32.mrf.mxu0
        %v685 = vadd.f32 0.0, %v684
        %686 = vdwg.mxu0
        %v687 = vadd.f32 %v545, %v683
        %v688 = vadd.f32 %v545, %v685
        %689 = vrot.lane.b32.xlu0 %v548, 112
        %v690 = vpop.permute.xlu0 %689
        %691 = vrot.lane.b32.xlu0 %v548, 80
        %v692 = vpop.permute.xlu0 %691
        %v694 = vsel %vm551, %v690, 0
        %v697 = vsel %vm551, %v692, 0
        %699 = vmatpush.bf16.xpose.msra.mxu0 0
        %700 = vmatpush.bf16.xpose.msra.mxu0 0
        %701 = vmatpush.bf16.xpose.msra.mxu0 0
        %702 = vmatpush.bf16.xpose.msra.mxu0 0
        %703 = vmatpush.bf16.xpose.msra.mxu0 0
        %704 = vmatpush.bf16.xpose.msra.mxu0 0
        %705 = vmatpush.bf16.xpose.msra.mxu0 0
        %706 = vmatpush.bf16.xpose.msra.mxu0 %v697
        %707 = vmatmul.bf16.gmra.mxu0 %v694
        %v708 = vpop.f32.mrf.mxu0
        %v709 = vadd.f32 0.0, %v708
        %v710 = vpop.f32.mrf.mxu0
        %711 = vdwg.mxu0
        %712 = vrot.lane.b32.xlu0 %v573, 112
        %v713 = vpop.permute.xlu0 %712
        %714 = vrot.lane.b32.xlu0 %v573, 80
        %v715 = vpop.permute.xlu0 %714
        %v717 = vsel %vm551, %v713, 0
        %v720 = vsel %vm551, %v715, 0
        %722 = vmatpush.bf16.xpose.msra.mxu0 0
        %723 = vmatpush.bf16.xpose.msra.mxu0 0
        %724 = vmatpush.bf16.xpose.msra.mxu0 0
        %725 = vmatpush.bf16.xpose.msra.mxu0 0
        %726 = vmatpush.bf16.xpose.msra.mxu0 0
        %727 = vmatpush.bf16.xpose.msra.mxu0 0
        %728 = vmatpush.bf16.xpose.msra.mxu0 0
        %729 = vmatpush.bf16.xpose.msra.mxu0 %v720
        %730 = vmatmul.bf16.gmra.mxu0 %v717
        %v731 = vpop.f32.mrf.mxu0
        %v732 = vadd.f32 0.0, %v731
        %v733 = vpop.f32.mrf.mxu0
        %734 = vdwg.mxu0
        %v735 = vsel %vm595, %v709, -inf
        %736 = vmax.xlane.f32.xlu0 %v735
        %v737 = vpop.xlane.xlu0 %736
        %v738 = vsel %vm595, %v732, -inf
        %739 = vmax.xlane.f32.xlu0 %v738
        %v740 = vpop.xlane.xlu0 %739
        %v741 = vsub.f32 %v709, %v737
        %v742 = vsub.f32 %v732, %v740
        %v743 = vmul.f32 %v741, 1.442695
        %v744 = vpow.pop %v743
        %v745 = vmul.f32 %v742, 1.442695
        %v746 = vpow.pop %v745
        %v747 = vsel %vm595, %v744, 0.0
        %748 = vadd.xlane.f32.xlu0 %v747
        %v749 = vpop.xlane.xlu0 %748
        %v750 = vsel %vm595, %v746, 0.0
        %751 = vadd.xlane.f32.xlu0 %v750
        %v752 = vpop.xlane.xlu0 %751
        %v753 = vrcp.pop %v749
        %v754 = vrcp.pop %v752
        %v755 = vmul.f32 %v744, %v753
        %v756 = vmul.f32 %v746, %v754
        %v757 = vpack.c.bf16 %v755, %v755
        %v758 = vpack.c.bf16 %v756, %v756
        %759 = vrot.lane.b32.xlu0 %v548, 48
        %v760 = vpop.permute.xlu0 %759
        %v762 = vsel %vm595, %v757, 0
        %v765 = vsel %vm625, %v760, 0
        %767 = vmatpush.bf16.msra.mxu0 0
        %768 = vmatpush.bf16.msra.mxu0 0
        %769 = vmatpush.bf16.msra.mxu0 0
        %770 = vmatpush.bf16.msra.mxu0 0
        %771 = vmatpush.bf16.msra.mxu0 0
        %772 = vmatpush.bf16.msra.mxu0 0
        %773 = vmatpush.bf16.msra.mxu0 0
        %774 = vmatpush.bf16.msra.mxu0 %v765
        %775 = vmatmul.bf16.gmra.mxu0 %v762
        %v776 = vpop.f32.mrf.mxu0
        %v777 = vadd.f32 0.0, %v776
        %v778 = vpop.f32.mrf.mxu0
        %779 = vdwg.mxu0
        %780 = vrot.lane.b32.xlu0 %v573, 48
        %v781 = vpop.permute.xlu0 %780
        %v783 = vsel %vm595, %v758, 0
        %v786 = vsel %vm625, %v781, 0
        %788 = vmatpush.bf16.msra.mxu0 0
        %789 = vmatpush.bf16.msra.mxu0 0
        %790 = vmatpush.bf16.msra.mxu0 0
        %791 = vmatpush.bf16.msra.mxu0 0
        %792 = vmatpush.bf16.msra.mxu0 0
        %793 = vmatpush.bf16.msra.mxu0 0
        %794 = vmatpush.bf16.msra.mxu0 0
        %795 = vmatpush.bf16.msra.mxu0 %v786
        %796 = vmatmul.bf16.gmra.mxu0 %v783
        %v797 = vpop.f32.mrf.mxu0
        %v798 = vadd.f32 0.0, %v797
        %v799 = vpop.f32.mrf.mxu0
        %800 = vdwg.mxu0
        %v801 = vpack.c.bf16 %v798, %v777
        %v804 = vunpack.c.l.b16 %v538
        %v805 = vunpack.c.l.b16 %v539
        %v806 = vpack.c.b16 %v805, %v804
        %v809 = vsel %vm551, %v801, 0
        %811 = vmatpush.bf16.msra.mxu0 0
        %812 = vmatpush.bf16.msra.mxu0 0
        %813 = vmatpush.bf16.msra.mxu0 0
        %814 = vmatpush.bf16.msra.mxu0 0
        %815 = vmatpush.bf16.msra.mxu0 0
        %816 = vmatpush.bf16.msra.mxu0 0
        %817 = vmatpush.bf16.msra.mxu0 0
        %818 = vmatpush.bf16.msra.mxu0 %v806
        %819 = vmatmul.bf16.gmra.mxu0 %v809
        %v820 = vpop.f32.mrf.mxu0
        %v821 = vadd.f32 0.0, %v820
        %v822 = vpop.f32.mrf.mxu0
        %v823 = vadd.f32 0.0, %v822
        %824 = vdwg.mxu0
        %v825 = vadd.f32 %v687, %v821
        %v826 = vadd.f32 %v688, %v823
        %v827 = vadd.f32 %v487, %v825
        %v828 = vadd.f32 %v488, %v826
        %s829 = scalar_lea.vmem %s6, %s31
        %v830 = vld [vmem:[%s829] sm:$0x1]
        %s831 = scalar_lea.vmem %s7, %s31
        %v832 = vld [vmem:[%s831] sm:$0x1]
        %v833 = vsel %vm514, %v827, 0.0
        %834 = vadd.xlane.f32.xlu0 %v833
        %v835 = vpop.xlane.xlu0 %834
        %v836 = vsel %vm514, %v828, 0.0
        %837 = vadd.xlane.f32.xlu0 %v836
        %v838 = vpop.xlane.xlu0 %837
        %v839 = vrcp.pop 32.0
        %v840 = vmul.f32 32.0, %v839
        %v841 = vsub.f32 1.0, %v840
        %v842 = vmul.f32 %v839, %v841
        %v843 = vadd.f32 %v839, %v842
        %vm844 = vweird.f32 %v839
        %v845 = vsel %vm844, %v839, %v843
        %v846 = vmul.f32 %v835, %v845
        %v847 = vmul.f32 %v838, %v845
        %v848 = vsub.f32 %v827, %v846
        %v849 = vsub.f32 %v828, %v847
        %v850 = vmul.f32 %v848, %v848
        %v851 = vmul.f32 %v849, %v849
        %v852 = vsel %vm514, %v850, 0.0
        %853 = vadd.xlane.f32.xlu0 %v852
        %v854 = vpop.xlane.xlu0 %853
        %v855 = vsel %vm514, %v851, 0.0
        %856 = vadd.xlane.f32.xlu0 %v855
        %v857 = vpop.xlane.xlu0 %856
        %v858 = vmul.f32 %v854, %v845
        %v859 = vmul.f32 %v857, %v845
        %v860 = vadd.f32 %v858, 1e-05
        %v861 = vadd.f32 %v859, 1e-05
        %v862 = vrsqrt.pop %v860
        %v863 = vmul.f32 %v862, %v860
        %v864 = vmul.f32 %v863, %v862
        %v865 = vmul.f32 0.5, %v864
        %v866 = vsub.f32 1.5, %v865
        %v867 = vmul.f32 %v862, %v866
        %vm868 = vweird.f32 %v860
        %vm869 = vweird.f32 %v862
        %vm870 = vmor %vm868, %vm869
        %v871 = vsel %vm870, %v862, %v867
        %v872 = vrsqrt.pop %v861
        %v873 = vmul.f32 %v872, %v861
        %v874 = vmul.f32 %v873, %v872
        %v875 = vmul.f32 0.5, %v874
        %v876 = vsub.f32 1.5, %v875
        %v877 = vmul.f32 %v872, %v876
        %vm878 = vweird.f32 %v861
        %vm879 = vweird.f32 %v872
        %vm880 = vmor %vm878, %vm879
        %v881 = vsel %vm880, %v872, %v877
        %v882 = vmul.f32 %v848, %v871
        %v883 = vmul.f32 %v849, %v881
        %v885 = vperm.slane %v830, 0
        %v887 = vmul.f32 %v882, %v885
        %v888 = vmul.f32 %v883, %v885
        %v890 = vperm.slane %v832, 0
        %v892 = vadd.f32 %v887, %v890
        %v893 = vadd.f32 %v888, %v890
        %v894 = vpack.c.bf16 %v893, %v892
        %s895 = smul.addr %s490, 4
        %s896 = scalar_lea.vmem %s8, %s895
        %v897 = vld [vmem:[%s896] sm:$0xf]
        %v898 = vld [vmem:[%s896 + $0x4] sm:$0xf]
        %v899 = vld [vmem:[%s896 + $0x8] sm:$0xf]
        %v900 = vld [vmem:[%s896 + $0xc] sm:$0xf]
        %s901 = scalar_lea.vmem %s9, %s31
        %v902 = vld [vmem:[%s901] sm:$0x1]
        %v904 = vperm.slane %v902, 0
        %v910 = vunpack.c.l.b16 %v897
        %v911 = vunpack.c.l.b16 %v898
        %v912 = vunpack.c.l.b16 %v899
        %v913 = vunpack.c.l.b16 %v900
        %v914 = vpack.c.b16 %v911, %v910
        %v915 = vpack.c.b16 %v913, %v912
        %v919 = vsel %vm514, %v894, 0
        %921 = vmatpush.bf16.msra.mxu0 0
        %922 = vmatpush.bf16.msra.mxu0 0
        %923 = vmatpush.bf16.msra.mxu0 0
        %924 = vmatpush.bf16.msra.mxu0 0
        %925 = vmatpush.bf16.msra.mxu0 0
        %926 = vmatpush.bf16.msra.mxu0 0
        %927 = vmatpush.bf16.msra.mxu0 %v915
        %928 = vmatpush.bf16.msra.mxu0 %v914
        %929 = vmatmul.bf16.gmra.mxu0 %v919
        %v930 = vpop.f32.mrf.mxu0
        %v931 = vadd.f32 %v904, %v930
        %v932 = vpop.f32.mrf.mxu0
        %v933 = vadd.f32 %v904, %v932
        %934 = vdwg.mxu0
        %v935 = vmax.f32 %v931, 0.0
        %v936 = vmax.f32 %v933, 0.0
        %v937 = vpack.c.bf16 %v936, %v935
        %s938 = smul.u32 %s31, 16
        %s939 = smul.addr %s938, 4
        %s940 = scalar_lea.vmem %s10, %s939
        %v941 = vld [vmem:[%s940] sm:$0xf]
        %v942 = vld [vmem:[%s940 + $0x4] sm:$0xf]
        %v943 = vld [vmem:[%s940 + $0x8] sm:$0xf]
        %v944 = vld [vmem:[%s940 + $0xc] sm:$0xf]
        %v945 = vld [vmem:[%s940 + $0x10] sm:$0xf]
        %v946 = vld [vmem:[%s940 + $0x14] sm:$0xf]
        %v947 = vld [vmem:[%s940 + $0x18] sm:$0xf]
        %v948 = vld [vmem:[%s940 + $0x1c] sm:$0xf]
        %v949 = vld [vmem:[%s940 + $0x20] sm:$0xf]
        %v950 = vld [vmem:[%s940 + $0x24] sm:$0xf]
        %v951 = vld [vmem:[%s940 + $0x28] sm:$0xf]
        %v952 = vld [vmem:[%s940 + $0x2c] sm:$0xf]
        %v953 = vld [vmem:[%s940 + $0x30] sm:$0xf]
        %v954 = vld [vmem:[%s940 + $0x34] sm:$0xf]
        %v955 = vld [vmem:[%s940 + $0x38] sm:$0xf]
        %v956 = vld [vmem:[%s940 + $0x3c] sm:$0xf]
        %s957 = scalar_lea.vmem %s11, %s31
        %v958 = vld [vmem:[%s957] sm:$0x1]
        %v960 = vperm.slane %v958, 0
        %v978 = vunpack.c.l.b16 %v941
        %v979 = vunpack.c.l.b16 %v942
        %v980 = vunpack.c.l.b16 %v943
        %v981 = vunpack.c.l.b16 %v944
        %v982 = vunpack.c.l.b16 %v945
        %v983 = vunpack.c.l.b16 %v946
        %v984 = vunpack.c.l.b16 %v947
        %v985 = vunpack.c.l.b16 %v948
        %v986 = vunpack.c.l.b16 %v949
        %v987 = vunpack.c.l.b16 %v950
        %v988 = vunpack.c.l.b16 %v951
        %v989 = vunpack.c.l.b16 %v952
        %v990 = vunpack.c.l.b16 %v953
        %v991 = vunpack.c.l.b16 %v954
        %v992 = vunpack.c.l.b16 %v955
        %v993 = vunpack.c.l.b16 %v956
        %v994 = vpack.c.b16 %v979, %v978
        %v995 = vpack.c.b16 %v981, %v980
        %v996 = vpack.c.b16 %v983, %v982
        %v997 = vpack.c.b16 %v985, %v984
        %v998 = vpack.c.b16 %v987, %v986
        %v999 = vpack.c.b16 %v989, %v988
        %v1000 = vpack.c.b16 %v991, %v990
        %v1001 = vpack.c.b16 %v993, %v992
        %1010 = vmatpush.bf16.msra.mxu0 %v1001
        %1011 = vmatpush.bf16.msra.mxu0 %v1000
        %1012 = vmatpush.bf16.msra.mxu0 %v999
        %1013 = vmatpush.bf16.msra.mxu0 %v998
        %1014 = vmatpush.bf16.msra.mxu0 %v997
        %1015 = vmatpush.bf16.msra.mxu0 %v996
        %1016 = vmatpush.bf16.msra.mxu0 %v995
        %1017 = vmatpush.bf16.msra.mxu0 %v994
        %1018 = vmatmul.bf16.gmra.mxu0 %v937
        %v1019 = vpop.f32.mrf.mxu0
        %v1020 = vadd.f32 %v960, %v1019
        %v1021 = vpop.f32.mrf.mxu0
        %v1022 = vadd.f32 %v960, %v1021
        %1023 = vdwg.mxu0
        %v1024 = vadd.f32 %v892, %v1020
        %v1025 = vadd.f32 %v893, %v1022
        %s1026 = scalar_lea.vmem %s12, %s31
        %v1027 = vld [vmem:[%s1026] sm:$0x1]
        %s1028 = scalar_lea.vmem %s13, %s31
        %v1029 = vld [vmem:[%s1028] sm:$0x1]
        %v1030 = vsel %vm514, %v1024, 0.0
        %1031 = vadd.xlane.f32.xlu0 %v1030
        %v1032 = vpop.xlane.xlu0 %1031
        %v1033 = vsel %vm514, %v1025, 0.0
        %1034 = vadd.xlane.f32.xlu0 %v1033
        %v1035 = vpop.xlane.xlu0 %1034
        %v1036 = vmul.f32 %v1032, %v845
        %v1037 = vmul.f32 %v1035, %v845
        %v1038 = vsub.f32 %v1024, %v1036
        %v1039 = vsub.f32 %v1025, %v1037
        %v1040 = vmul.f32 %v1038, %v1038
        %v1041 = vmul.f32 %v1039, %v1039
        %v1042 = vsel %vm514, %v1040, 0.0
        %1043 = vadd.xlane.f32.xlu0 %v1042
        %v1044 = vpop.xlane.xlu0 %1043
        %v1045 = vsel %vm514, %v1041, 0.0
        %1046 = vadd.xlane.f32.xlu0 %v1045
        %v1047 = vpop.xlane.xlu0 %1046
        %v1048 = vmul.f32 %v1044, %v845
        %v1049 = vmul.f32 %v1047, %v845
        %v1050 = vadd.f32 %v1048, 1e-05
        %v1051 = vadd.f32 %v1049, 1e-05
        %v1052 = vrsqrt.pop %v1050
        %v1053 = vmul.f32 %v1052, %v1050
        %v1054 = vmul.f32 %v1053, %v1052
        %v1055 = vmul.f32 0.5, %v1054
        %v1056 = vsub.f32 1.5, %v1055
        %v1057 = vmul.f32 %v1052, %v1056
        %vm1058 = vweird.f32 %v1050
        %vm1059 = vweird.f32 %v1052
        %vm1060 = vmor %vm1058, %vm1059
        %v1061 = vsel %vm1060, %v1052, %v1057
        %v1062 = vrsqrt.pop %v1051
        %v1063 = vmul.f32 %v1062, %v1051
        %v1064 = vmul.f32 %v1063, %v1062
        %v1065 = vmul.f32 0.5, %v1064
        %v1066 = vsub.f32 1.5, %v1065
        %v1067 = vmul.f32 %v1062, %v1066
        %vm1068 = vweird.f32 %v1051
        %vm1069 = vweird.f32 %v1062
        %vm1070 = vmor %vm1068, %vm1069
        %v1071 = vsel %vm1070, %v1062, %v1067
        %v1072 = vmul.f32 %v1038, %v1061
        %v1073 = vmul.f32 %v1039, %v1071
        %v1075 = vperm.slane %v1027, 0
        %v1077 = vmul.f32 %v1072, %v1075
        %v1078 = vmul.f32 %v1073, %v1075
        %v1080 = vperm.slane %v1029, 0
        %v1082 = vadd.f32 %v1077, %v1080
        %v1083 = vadd.f32 %v1078, %v1080
        %1084 = vst.msk [vmem:[#allocation2] sm:$0xff] %vm514, %v1082
        %1085 = vst.msk [vmem:[#allocation2 + $0x8] sm:$0xff] %vm514, %v1083
        %p1086 = scmp.eq.s32.totalorder %s31, 1
        // Predicated region
        $region81: #{tpu_custom_call.1} parent=75 // pred_check
          %p1087 = pneg %p1086
        $region82: #{tpu_custom_call.1} parent=75 // pred_check_branch
          %1089 = sbr.rel (%p1087) target = $region84
        $region83: #{tpu_custom_call.1} parent=75 // pred_region
          %1090 = vst.msk [vmem:[#allocation3] sm:$0xff] %vm514, %v1082
          %1091 = vst.msk [vmem:[#allocation3 + $0x8] sm:$0xff] %vm514, %v1083
        $region84: #{tpu_custom_call.1} parent=75 // pred_fallthru
          _
        // Predicated region
        $region85: #{tpu_custom_call.1} parent=75 // pred_check
          %p1092 = pneg %p355
        $region86: #{tpu_custom_call.1} parent=75 // pred_check_branch
          %1094 = sbr.rel (%p1092) target = $region88
        $region87: #{tpu_custom_call.1} parent=75 // pred_region
          %s1095 = smul.u32 2, %s30
          %1097 = vsyncadd [#allocation4], 0
          %s1098 = smul.addr %s1095, 8
          %s1099 = scalar_lea.hbm %s14, %s1098
          %s1100 = sshll.u32 [#allocation3], 4
          %s1101 = int_to_ptr.vmem [resolvable:$true] %s1100
          %s1102 = sshll.u32 %s1099, 4
          %s1103 = int_to_ptr.hbm [resolvable:$true] %s1102
          %1108 = dma.vmem_to_hbm [thread:$0]  %s1101, 256, %s1103, [#allocation4], 128, 128, 8
        $region88: #{tpu_custom_call.1} parent=75 // pred_fallthru
          _
        // Predicated region
        $region89: #{tpu_custom_call.1} parent=75 // pred_check
          %p1109 = pneg %p355
        $region90: #{tpu_custom_call.1} parent=75 // pred_check_branch
          %1111 = sbr.rel (%p1109) target = $region92
        $region91: #{tpu_custom_call.1} parent=75 // pred_region
          %1113 = dma.done [#allocation4], 256
        $region92: #{tpu_custom_call.1} parent=75 // pred_fallthru
          _
      $region76: #{tpu_custom_call.1} parent=5 // pred_fallthru
        _
      %p1114 = scmp.le.s32.totalorder 2, %s21
      // Predicated region
      $region93: #{tpu_custom_call.1} parent=5 // pred_check
        %p1115 = pneg %p1114
      $region94: #{tpu_custom_call.1} parent=5 // pred_check_branch
        %1117 = sbr.rel (%p1115) target = $region96
      $region95: #{tpu_custom_call.1} parent=5 // pred_region
        %s1118 = ssub.s32 %s21, 2
      $region96: #{tpu_custom_call.1} parent=5 // pred_fallthru
        _
    $region6: #{tpu_custom_call.1} parent=1 // loop_footer
      %s25 = sadd.s32 1, %s21
    $region7: #{tpu_custom_call.1} parent=1 // loop_footer_branch
      %20 = sbr.rel target = $region3
    $region8: #{tpu_custom_call.1} parent=1 // loop_exit
      _
    %1119 = vsyncpa [#allocation4], 1
    %s1120 = scalar_lea.sflag [#allocation4], 1
    %1121 = vsyncpa %s1120, 1

</llo_original>
